<compile_context>
chip_gen: v6e
topology: v6e:2x2x1
jax: 0.10.0
libtpu: 0.0.40
codegen_flags: <defaults>
</compile_context>

<pallas_src>
import math
import functools

import jax
import jax.numpy as jnp
from jax.experimental import pallas as pl
from jax.experimental.pallas import tpu as pltpu


def _round_up(x, m):
    return (x + m - 1) // m * m


# ----------------------------- Pallas kernels -----------------------------

def _mha_ln_kernel(x_ref, wq_ref, bq_ref, wk_ref, bk_ref, wv_ref, bv_ref,
                   wo_ref, bo_ref, g_ref, b_ref, o_ref, *, scale, eps):
    """One batch element: QKV proj + MHA + out proj + residual + LayerNorm."""
    x = x_ref[0]                                        # [S, D] f32
    s_len, d_model = x.shape
    nhead = wq_ref.shape[0]
    xb = x.astype(jnp.bfloat16)                         # hoisted cast (MXU input)

    acc = jnp.zeros((s_len, d_model), jnp.float32)
    for h in range(nhead):                              # static unrolled head loop
        q = jnp.dot(xb, wq_ref[h], preferred_element_type=jnp.float32) + bq_ref[h]
        k = jnp.dot(xb, wk_ref[h], preferred_element_type=jnp.float32) + bk_ref[h]
        v = jnp.dot(xb, wv_ref[h], preferred_element_type=jnp.float32) + bv_ref[h]
        q = q * scale
        # q @ k^T expressed as a contraction over the head dim (no explicit .T)
        scores = jax.lax.dot_general(
            q.astype(jnp.bfloat16), k.astype(jnp.bfloat16),
            (((1,), (1,)), ((), ())), preferred_element_type=jnp.float32)  # [S,S]
        m = jnp.max(scores, axis=-1, keepdims=True)
        p_un = jnp.exp(scores - m)
        l = jnp.sum(p_un, axis=-1, keepdims=True)
        p = p_un * pl.reciprocal(l, approx=True)        # EUP, not VPU divide
        o_h = jnp.dot(p.astype(jnp.bfloat16), v.astype(jnp.bfloat16),
                      preferred_element_type=jnp.float32)                  # [S,Dh]
        acc = acc + jnp.dot(o_h.astype(jnp.bfloat16), wo_ref[h],
                            preferred_element_type=jnp.float32)            # [S,D]

    z = x + acc + bo_ref[...]                           # residual + out-proj bias
    mean = jnp.mean(z, axis=-1, keepdims=True)
    var = jnp.mean((z - mean) ** 2, axis=-1, keepdims=True)
    o_ref[0] = (z - mean) * jax.lax.rsqrt(var + eps) * g_ref[...] + b_ref[...]


def _ffn_ln_kernel(x_ref, w1_ref, b1_ref, w2_ref, b2_ref, g_ref, b_ref, o_ref,
                   *, eps):
    """linear2(relu(linear1(x))) + residual + LayerNorm on one row tile."""
    x = x_ref[...]                                      # [TM, D] f32
    h = jnp.dot(x.astype(jnp.bfloat16), w1_ref[...],
                preferred_element_type=jnp.float32) + b1_ref[...]
    h = jnp.maximum(h, 0.0)
    y = jnp.dot(h.astype(jnp.bfloat16), w2_ref[...],
                preferred_element_type=jnp.float32) + b2_ref[...]
    z = x + y
    mean = jnp.mean(z, axis=-1, keepdims=True)
    var = jnp.mean((z - mean) ** 2, axis=-1, keepdims=True)
    o_ref[...] = (z - mean) * jax.lax.rsqrt(var + eps) * g_ref[...] + b_ref[...]


def _linear_kernel(x_ref, w_ref, b_ref, o_ref):
    """y = x @ W + b on a (row tile, vocab tile) block (W pre-transposed)."""
    o_ref[...] = (jnp.dot(x_ref[...].astype(jnp.bfloat16), w_ref[...],
                          preferred_element_type=jnp.float32) + b_ref[...])


# ----------------------------- kernel wrappers -----------------------------

def attention_block(x_bsd, p, *, nhead, eps=1e-5):
    """Fused self-attention + residual + LN1.  x_bsd: [B, S, D] f32."""
    b, s, d = x_bsd.shape
    dh = d // nhead
    x_spec = pl.BlockSpec((1, s, d), lambda i: (i, 0, 0))
    w3 = lambda shape: pl.BlockSpec(shape, lambda i: (0, 0, 0))   # resident weights
    w2 = lambda shape: pl.BlockSpec(shape, lambda i: (0, 0))
    return pl.pallas_call(
        functools.partial(_mha_ln_kernel, scale=1.0 / math.sqrt(dh), eps=eps),
        out_shape=jax.ShapeDtypeStruct((b, s, d), jnp.float32),
        grid=(b,),
        in_specs=[x_spec,
                  w3((nhead, d, dh)), w3((nhead, 1, dh)),
                  w3((nhead, d, dh)), w3((nhead, 1, dh)),
                  w3((nhead, d, dh)), w3((nhead, 1, dh)),
                  w3((nhead, dh, d)), w2((1, d)),
                  w2((1, d)), w2((1, d))],
        out_specs=x_spec,
        compiler_params=pltpu.CompilerParams(dimension_semantics=("parallel",)),
    )(x_bsd, p["wq"], p["bq"], p["wk"], p["bk"], p["wv"], p["bv"],
      p["wo"], p["bo"], p["ln1_g"], p["ln1_b"])


def ffn_block(x, p, *, eps=1e-5, tm=256):
    """Fused FFN + residual + LN2 on flattened [M, D] rows, row-tiled grid."""
    m, d = x.shape
    d_hid = p["w1_t"].shape[1]
    tm = min(tm, _round_up(m, 8))
    m_pad = _round_up(m, tm)
    if m_pad != m:
        x = jnp.pad(x, ((0, m_pad - m), (0, 0)))
    out = pl.pallas_call(
        functools.partial(_ffn_ln_kernel, eps=eps),
        out_shape=jax.ShapeDtypeStruct((m_pad, d), jnp.float32),
        grid=(m_pad // tm,),
        in_specs=[pl.BlockSpec((tm, d), lambda i: (i, 0)),
                  pl.BlockSpec((d, d_hid), lambda i: (0, 0)),
                  pl.BlockSpec((1, d_hid), lambda i: (0, 0)),
                  pl.BlockSpec((d_hid, d), lambda i: (0, 0)),
                  pl.BlockSpec((1, d), lambda i: (0, 0)),
                  pl.BlockSpec((1, d), lambda i: (0, 0)),
                  pl.BlockSpec((1, d), lambda i: (0, 0))],
        out_specs=pl.BlockSpec((tm, d), lambda i: (i, 0)),
        compiler_params=pltpu.CompilerParams(dimension_semantics=("parallel",)),
    )(x, p["w1_t"], p["b1"], p["w2_t"], p["b2"], p["ln2_g"], p["ln2_b"])
    return out[:m]


def linear_tiled(x, w_t, b_row, n_valid, *, tm=256, tn=128):
    """Vocab projection, tiled (rows x 128-wide lane-dense vocab blocks)."""
    m, d = x.shape
    n_pad = w_t.shape[1]                       # already padded to multiple of 128
    tm = min(tm, _round_up(m, 8))
    m_pad = _round_up(m, tm)
    if m_pad != m:
        x = jnp.pad(x, ((0, m_pad - m), (0, 0)))
    tn = min(tn, n_pad)
    out = pl.pallas_call(
        _linear_kernel,
        out_shape=jax.ShapeDtypeStruct((m_pad, n_pad), jnp.float32),
        grid=(m_pad // tm, n_pad // tn),
        in_specs=[pl.BlockSpec((tm, d), lambda i, j: (i, 0)),
                  pl.BlockSpec((d, tn), lambda i, j: (0, j)),
                  pl.BlockSpec((1, tn), lambda i, j: (0, j))],
        out_specs=pl.BlockSpec((tm, tn), lambda i, j: (i, j)),
        compiler_params=pltpu.CompilerParams(
            dimension_semantics=("parallel", "parallel")),
    )(x, w_t, b_row)
    return out[:m, :n_valid]


# ------------------------- model definition (glue) -------------------------

def sinusoidal_pe(max_len, d_model):
    position = jnp.arange(max_len, dtype=jnp.float32)[:, None]
    div_term = jnp.exp(jnp.arange(0, d_model, 2, dtype=jnp.float32)
                       * (-math.log(10000.0) / d_model))
    pe = jnp.zeros((max_len, d_model), jnp.float32)
    pe = pe.at[:, 0::2].set(jnp.sin(position * div_term))
    pe = pe.at[:, 1::2].set(jnp.cos(position * div_term))
    return pe


def init_params(key, ntoken, d_model, d_hid, nlayers):
    """Parameters in PyTorch nn.Module layout ([out, in] weights)."""
    keys = iter(jax.random.split(key, 2 + 4 * nlayers))

    def u(shape, r=0.1):
        return jax.random.uniform(next(keys), shape, jnp.float32, -r, r)

    params = {
        "emb": u((ntoken, d_model)),                 # nn.Embedding weight
        "lin_w": u((ntoken, d_model)),               # final nn.Linear weight
        "lin_b": jnp.zeros((ntoken,), jnp.float32),  # zeroed in init_weights
        "layers": [],
    }
    for _ in range(nlayers):
        params["layers"].append({
            "in_proj_w": u((3 * d_model, d_model)),
            "in_proj_b": jnp.zeros((3 * d_model,), jnp.float32),
            "out_proj_w": u((d_model, d_model)),
            "out_proj_b": jnp.zeros((d_model,), jnp.float32),
            "w1": u((d_hid, d_model)),
            "b1": jnp.zeros((d_hid,), jnp.float32),
            "w2": u((d_model, d_hid)),
            "b2": jnp.zeros((d_model,), jnp.float32),
            "ln1_g": jnp.ones((d_model,), jnp.float32),
            "ln1_b": jnp.zeros((d_model,), jnp.float32),
            "ln2_g": jnp.ones((d_model,), jnp.float32),
            "ln2_b": jnp.zeros((d_model,), jnp.float32),
        })
    return params


def prepare_params(params, nhead):
    """Host-side, one-time: pre-transpose to [in, out], split heads, cast MXU
    weights to bf16, pad the vocab projection to a lane-dense (x128) width."""
    d_model = params["emb"].shape[1]
    dh = d_model // nhead
    ntoken = params["lin_w"].shape[0]
    n_pad = _round_up(ntoken, 128)
    bf = lambda a: a.astype(jnp.bfloat16)

    out = {"emb": params["emb"], "layers": []}
    w = params["lin_w"].T                                         # [D, ntoken]
    out["lin_w_t"] = bf(jnp.pad(w, ((0, 0), (0, n_pad - ntoken))))
    out["lin_b"] = jnp.pad(params["lin_b"], (0, n_pad - ntoken)).reshape(1, n_pad)

    for p in params["layers"]:
        wq, wk, wv = jnp.split(p["in_proj_w"], 3, axis=0)         # [D, D] each
        bq, bk, bv = jnp.split(p["in_proj_b"], 3, axis=0)

        def per_head_w(w_):   # [D_out, D_in] -> [H, D_in, Dh]  (pre-transposed)
            return bf(w_.T.reshape(d_model, nhead, dh).transpose(1, 0, 2))

        def per_head_b(b_):   # [D] -> [H, 1, Dh]
            return b_.reshape(nhead, 1, dh)

        out["layers"].append({
            "wq": per_head_w(wq), "bq": per_head_b(bq),
            "wk": per_head_w(wk), "bk": per_head_b(bk),
            "wv": per_head_w(wv), "bv": per_head_b(bv),
            "wo": bf(p["out_proj_w"].T.reshape(nhead, dh, d_model)),
            "bo": p["out_proj_b"].reshape(1, d_model),
            "w1_t": bf(p["w1"].T), "b1": p["b1"].reshape(1, -1),
            "w2_t": bf(p["w2"].T), "b2": p["b2"].reshape(1, -1),
            "ln1_g": p["ln1_g"].reshape(1, -1), "ln1_b": p["ln1_b"].reshape(1, -1),
            "ln2_g": p["ln2_g"].reshape(1, -1), "ln2_b": p["ln2_b"].reshape(1, -1),
        })
    return out


def pretraining_model_forward(src, params, pe, *, d_model, nhead, ntoken):
    seq, batch = src.shape
    # TODO(synk): token-embedding gather stays in XLA glue (data-dependent gather).
    x = params["emb"][src] * math.sqrt(d_model) + pe[:seq][:, None, :]  # [S,B,D]
    x = x.transpose(1, 0, 2)                                            # [B,S,D]
    for p in params["layers"]:
        x = attention_block(x, p, nhead=nhead)                          # attn+LN1
        xf = ffn_block(x.reshape(batch * seq, d_model), p)              # ffn+LN2
        x = xf.reshape(batch, seq, d_model)
    logits = linear_tiled(x.reshape(batch * seq, d_model),
                          params["lin_w_t"], params["lin_b"], ntoken)
    return logits.reshape(batch, seq, ntoken).transpose(1, 0, 2)        # [S,B,V]


# ---------------------------------- main -----------------------------------

if __name__ == "__main__":
    ntoken, d_model, nhead, d_hid, nlayers = 50, 32, 4, 64, 2
    seq, batch = 8, 2

    key = jax.random.PRNGKey(0)
    k_param, k_src = jax.random.split(key)
    params = prepare_params(init_params(k_param, ntoken, d_model, d_hid, nlayers),
                            nhead)
    pe = sinusoidal_pe(64, d_model)
    src = jax.random.randint(k_src, (seq, batch), 0, ntoken, dtype=jnp.int32)

    fwd = jax.jit(functools.partial(pretraining_model_forward,
                                    d_model=d_model, nhead=nhead, ntoken=ntoken))
    out = fwd(src, params, pe)
    jax.block_until_ready(out)

    assert out.shape == (seq, batch, ntoken), out.shape
    assert out.dtype == jnp.float32
    assert bool(jnp.all(jnp.isfinite(out)))
    print("KERNEL_OK")
</pallas_src>

<mosaic_0001>
module attributes {stable_mosaic.version = 11 : i64} {
  func.func @_linear_kernel(%arg0: i32, %arg1: i32, %arg2: memref<16x32xf32, #tpu.memory_space<vmem>>, %arg3: memref<32x128xbf16, #tpu.memory_space<vmem>>, %arg4: memref<1x128xf32, #tpu.memory_space<vmem>>, %arg5: memref<16x128xf32, #tpu.memory_space<vmem>>) attributes {dimension_semantics = [#tpu.dimension_semantics<parallel>, #tpu.dimension_semantics<parallel>], iteration_bounds = array<i64: 1, 1>, scalar_prefetch = 0 : i64, scratch_operands = 0 : i64, tpu.core_type = #tpu.core_type<tc>, window_params = [{transform_indices = @transform_0, window_bounds = array<i64: 16, 32>}, {transform_indices = @transform_1, window_bounds = array<i64: 32, 128>}, {transform_indices = @transform_2, window_bounds = array<i64: 1, 128>}, {transform_indices = @transform_3, window_bounds = array<i64: 16, 128>}]} {
    %c0 = arith.constant 0 : index
    %c0_0 = arith.constant 0 : index
    %0 = vector.load %arg2[%c0, %c0_0] : memref<16x32xf32, #tpu.memory_space<vmem>>, vector<16x32xf32>
    %1 = arith.truncf %0 : vector<16x32xf32> to vector<16x32xbf16>
    %c0_1 = arith.constant 0 : index
    %c0_2 = arith.constant 0 : index
    %2 = vector.load %arg3[%c0_1, %c0_2] : memref<32x128xbf16, #tpu.memory_space<vmem>>, vector<32x128xbf16>
    %cst = arith.constant dense<0.000000e+00> : vector<16x128xf32>
    %3 = tpu.matmul %1, %2, %cst {dimension_numbers = #tpu.dot_dimension_numbers<[1], [0], [0], [1], [0, 0, 1, 1], [], []>} : vector<16x32xbf16>, vector<32x128xbf16>, vector<16x128xf32> -> vector<16x128xf32>
    %c0_3 = arith.constant 0 : index
    %c0_4 = arith.constant 0 : index
    %4 = vector.load %arg4[%c0_3, %c0_4] : memref<1x128xf32, #tpu.memory_space<vmem>>, vector<1x128xf32>
    %5 = vector.broadcast %4 : vector<1x128xf32> to vector<16x128xf32>
    %6 = arith.addf %3, %5 : vector<16x128xf32>
    %c0_5 = arith.constant 0 : index
    %c0_6 = arith.constant 0 : index
    %7 = vector.load %arg5[%c0_5, %c0_6] : memref<16x128xf32, #tpu.memory_space<vmem>>, vector<16x128xf32>
    tpu.vector_store %arg5[%c0_5, %c0_6], %6 {strides = array<i32>} : memref<16x128xf32, #tpu.memory_space<vmem>>, vector<16x128xf32>,
    return
  }
  func.func @transform_0(%arg0: i32, %arg1: i32) -> (i32, i32) {
    %c0_i32 = arith.constant 0 : i32
    %c0_i32_0 = arith.constant 0 : i32
    return %arg0, %c0_i32 : i32, i32
  }
  func.func @transform_1(%arg0: i32, %arg1: i32) -> (i32, i32) {
    %c0_i32 = arith.constant 0 : i32
    %c0_i32_0 = arith.constant 0 : i32
    return %c0_i32, %arg1 : i32, i32
  }
  func.func @transform_2(%arg0: i32, %arg1: i32) -> (i32, i32) {
    %c0_i32 = arith.constant 0 : i32
    %c0_i32_0 = arith.constant 0 : i32
    return %c0_i32, %arg1 : i32, i32
  }
  func.func @transform_3(%arg0: i32, %arg1: i32) -> (i32, i32) {
    %c0_i32 = arith.constant 0 : i32
    return %arg0, %arg1 : i32, i32
  }
}

module attributes {stable_mosaic.version = 11 : i64} {
  func.func @_ffn_ln_kernel(%arg0: i32, %arg1: memref<16x32xf32, #tpu.memory_space<vmem>>, %arg2: memref<32x64xbf16, #tpu.memory_space<vmem>>, %arg3: memref<1x64xf32, #tpu.memory_space<vmem>>, %arg4: memref<64x32xbf16, #tpu.memory_space<vmem>>, %arg5: memref<1x32xf32, #tpu.memory_space<vmem>>, %arg6: memref<1x32xf32, #tpu.memory_space<vmem>>, %arg7: memref<1x32xf32, #tpu.memory_space<vmem>>, %arg8: memref<16x32xf32, #tpu.memory_space<vmem>>) attributes {dimension_semantics = [#tpu.dimension_semantics<parallel>], iteration_bounds = array<i64: 1>, scalar_prefetch = 0 : i64, scratch_operands = 0 : i64, tpu.core_type = #tpu.core_type<tc>, window_params = [{transform_indices = @transform_0, window_bounds = array<i64: 16, 32>}, {pipeline_mode = #tpu.pipeline_mode<synchronous>, transform_indices = @transform_1, window_bounds = array<i64: 32, 64>}, {pipeline_mode = #tpu.pipeline_mode<synchronous>, transform_indices = @transform_2, window_bounds = array<i64: 1, 64>}, {pipeline_mode = #tpu.pipeline_mode<synchronous>, transform_indices = @transform_3, window_bounds = array<i64: 64, 32>}, {pipeline_mode = #tpu.pipeline_mode<synchronous>, transform_indices = @transform_4, window_bounds = array<i64: 1, 32>}, {pipeline_mode = #tpu.pipeline_mode<synchronous>, transform_indices = @transform_5, window_bounds = array<i64: 1, 32>}, {pipeline_mode = #tpu.pipeline_mode<synchronous>, transform_indices = @transform_6, window_bounds = array<i64: 1, 32>}, {transform_indices = @transform_7, window_bounds = array<i64: 16, 32>}]} {
    %c0 = arith.constant 0 : index
    %c0_0 = arith.constant 0 : index
    %0 = vector.load %arg1[%c0, %c0_0] : memref<16x32xf32, #tpu.memory_space<vmem>>, vector<16x32xf32>
    %1 = arith.truncf %0 : vector<16x32xf32> to vector<16x32xbf16>
    %c0_1 = arith.constant 0 : index
    %c0_2 = arith.constant 0 : index
    %2 = vector.load %arg2[%c0_1, %c0_2] : memref<32x64xbf16, #tpu.memory_space<vmem>>, vector<32x64xbf16>
    %cst = arith.constant dense<0.000000e+00> : vector<16x64xf32>
    %3 = tpu.matmul %1, %2, %cst {dimension_numbers = #tpu.dot_dimension_numbers<[1], [0], [0], [1], [0, 0, 1, 1], [], []>} : vector<16x32xbf16>, vector<32x64xbf16>, vector<16x64xf32> -> vector<16x64xf32>
    %c0_3 = arith.constant 0 : index
    %c0_4 = arith.constant 0 : index
    %4 = vector.load %arg3[%c0_3, %c0_4] : memref<1x64xf32, #tpu.memory_space<vmem>>, vector<1x64xf32>
    %5 = vector.broadcast %4 : vector<1x64xf32> to vector<16x64xf32>
    %6 = arith.addf %3, %5 : vector<16x64xf32>
    %cst_5 = arith.constant 0.000000e+00 : f32
    %7 = vector.broadcast %cst_5 : f32 to vector<16x64xf32>
    %8 = arith.maximumf %6, %7 : vector<16x64xf32>
    %9 = arith.truncf %8 : vector<16x64xf32> to vector<16x64xbf16>
    %c0_6 = arith.constant 0 : index
    %c0_7 = arith.constant 0 : index
    %10 = vector.load %arg4[%c0_6, %c0_7] : memref<64x32xbf16, #tpu.memory_space<vmem>>, vector<64x32xbf16>
    %cst_8 = arith.constant dense<0.000000e+00> : vector<16x32xf32>
    %11 = tpu.matmul %9, %10, %cst_8 {dimension_numbers = #tpu.dot_dimension_numbers<[1], [0], [0], [1], [0, 0, 1, 1], [], []>} : vector<16x64xbf16>, vector<64x32xbf16>, vector<16x32xf32> -> vector<16x32xf32>
    %c0_9 = arith.constant 0 : index
    %c0_10 = arith.constant 0 : index
    %12 = vector.load %arg5[%c0_9, %c0_10] : memref<1x32xf32, #tpu.memory_space<vmem>>, vector<1x32xf32>
    %13 = vector.broadcast %12 : vector<1x32xf32> to vector<16x32xf32>
    %14 = arith.addf %11, %13 : vector<16x32xf32>
    %15 = arith.addf %0, %14 : vector<16x32xf32>
    %cst_11 = arith.constant dense<0.000000e+00> : vector<16xf32>
    %16 = vector.multi_reduction <add>, %15, %cst_11 [1] : vector<16x32xf32> to vector<16xf32>
    %17 = vector.shape_cast %16 : vector<16xf32> to vector<16x1xf32>
    %cst_12 = arith.constant 3.200000e+01 : f32
    %18 = vector.broadcast %cst_12 : f32 to vector<16x1xf32>
    %19 = arith.divf %17, %18 : vector<16x1xf32>
    %20 = vector.broadcast %19 : vector<16x1xf32> to vector<16x32xf32>
    %21 = arith.subf %15, %20 : vector<16x32xf32>
    %22 = arith.mulf %21, %21 : vector<16x32xf32>
    %cst_13 = arith.constant dense<0.000000e+00> : vector<16xf32>
    %23 = vector.multi_reduction <add>, %22, %cst_13 [1] : vector<16x32xf32> to vector<16xf32>
    %24 = vector.shape_cast %23 : vector<16xf32> to vector<16x1xf32>
    %cst_14 = arith.constant 3.200000e+01 : f32
    %25 = vector.broadcast %cst_14 : f32 to vector<16x1xf32>
    %26 = arith.divf %24, %25 : vector<16x1xf32>
    %27 = vector.broadcast %19 : vector<16x1xf32> to vector<16x32xf32>
    %28 = arith.subf %15, %27 : vector<16x32xf32>
    %cst_15 = arith.constant 9.99999974E-6 : f32
    %29 = vector.broadcast %cst_15 : f32 to vector<16x1xf32>
    %30 = arith.addf %26, %29 : vector<16x1xf32>
    %31 = math.rsqrt %30 : vector<16x1xf32>
    %32 = vector.broadcast %31 : vector<16x1xf32> to vector<16x32xf32>
    %33 = arith.mulf %28, %32 : vector<16x32xf32>
    %c0_16 = arith.constant 0 : index
    %c0_17 = arith.constant 0 : index
    %34 = vector.load %arg6[%c0_16, %c0_17] : memref<1x32xf32, #tpu.memory_space<vmem>>, vector<1x32xf32>
    %35 = vector.broadcast %34 : vector<1x32xf32> to vector<16x32xf32>
    %36 = arith.mulf %33, %35 : vector<16x32xf32>
    %c0_18 = arith.constant 0 : index
    %c0_19 = arith.constant 0 : index
    %37 = vector.load %arg7[%c0_18, %c0_19] : memref<1x32xf32, #tpu.memory_space<vmem>>, vector<1x32xf32>
    %38 = vector.broadcast %37 : vector<1x32xf32> to vector<16x32xf32>
    %39 = arith.addf %36, %38 : vector<16x32xf32>
    %c0_20 = arith.constant 0 : index
    %c0_21 = arith.constant 0 : index
    %40 = vector.load %arg8[%c0_20, %c0_21] : memref<16x32xf32, #tpu.memory_space<vmem>>, vector<16x32xf32>
    tpu.vector_store %arg8[%c0_20, %c0_21], %39 {strides = array<i32>} : memref<16x32xf32, #tpu.memory_space<vmem>>, vector<16x32xf32>,
    return
  }
  func.func @transform_0(%arg0: i32) -> (i32, i32) {
    %c0_i32 = arith.constant 0 : i32
    %c0_i32_0 = arith.constant 0 : i32
    return %arg0, %c0_i32 : i32, i32
  }
  func.func @transform_1(%arg0: i32) -> (i32, i32) {
    %c0_i32 = arith.constant 0 : i32
    %c0_i32_0 = arith.constant 0 : i32
    %c0_i32_1 = arith.constant 0 : i32
    return %c0_i32, %c0_i32_0 : i32, i32
  }
  func.func @transform_2(%arg0: i32) -> (i32, i32) {
    %c0_i32 = arith.constant 0 : i32
    %c0_i32_0 = arith.constant 0 : i32
    %c0_i32_1 = arith.constant 0 : i32
    return %c0_i32, %c0_i32_0 : i32, i32
  }
  func.func @transform_3(%arg0: i32) -> (i32, i32) {
    %c0_i32 = arith.constant 0 : i32
    %c0_i32_0 = arith.constant 0 : i32
    %c0_i32_1 = arith.constant 0 : i32
    return %c0_i32, %c0_i32_0 : i32, i32
  }
  func.func @transform_4(%arg0: i32) -> (i32, i32) {
    %c0_i32 = arith.constant 0 : i32
    %c0_i32_0 = arith.constant 0 : i32
    %c0_i32_1 = arith.constant 0 : i32
    return %c0_i32, %c0_i32_0 : i32, i32
  }
  func.func @transform_5(%arg0: i32) -> (i32, i32) {
    %c0_i32 = arith.constant 0 : i32
    %c0_i32_0 = arith.constant 0 : i32
    %c0_i32_1 = arith.constant 0 : i32
    return %c0_i32, %c0_i32_0 : i32, i32
  }
  func.func @transform_6(%arg0: i32) -> (i32, i32) {
    %c0_i32 = arith.constant 0 : i32
    %c0_i32_0 = arith.constant 0 : i32
    %c0_i32_1 = arith.constant 0 : i32
    return %c0_i32, %c0_i32_0 : i32, i32
  }
  func.func @transform_7(%arg0: i32) -> (i32, i32) {
    %c0_i32 = arith.constant 0 : i32
    %c0_i32_0 = arith.constant 0 : i32
    return %arg0, %c0_i32 : i32, i32
  }
}

module attributes {stable_mosaic.version = 11 : i64} {
  func.func @_mha_ln_kernel(%arg0: i32, %arg1: memref<1x8x32xf32, #tpu.memory_space<vmem>>, %arg2: memref<4x32x8xbf16, #tpu.memory_space<vmem>>, %arg3: memref<4x1x8xf32, #tpu.memory_space<vmem>>, %arg4: memref<4x32x8xbf16, #tpu.memory_space<vmem>>, %arg5: memref<4x1x8xf32, #tpu.memory_space<vmem>>, %arg6: memref<4x32x8xbf16, #tpu.memory_space<vmem>>, %arg7: memref<4x1x8xf32, #tpu.memory_space<vmem>>, %arg8: memref<4x8x32xbf16, #tpu.memory_space<vmem>>, %arg9: memref<1x32xf32, #tpu.memory_space<vmem>>, %arg10: memref<1x32xf32, #tpu.memory_space<vmem>>, %arg11: memref<1x32xf32, #tpu.memory_space<vmem>>, %arg12: memref<1x8x32xf32, #tpu.memory_space<vmem>>) attributes {dimension_semantics = [#tpu.dimension_semantics<parallel>], iteration_bounds = array<i64: 2>, scalar_prefetch = 0 : i64, scratch_operands = 0 : i64, tpu.core_type = #tpu.core_type<tc>, window_params = [{transform_indices = @transform_0, window_bounds = array<i64: 1, 8, 32>}, {pipeline_mode = #tpu.pipeline_mode<synchronous>, transform_indices = @transform_1, window_bounds = array<i64: 4, 32, 8>}, {pipeline_mode = #tpu.pipeline_mode<synchronous>, transform_indices = @transform_2, window_bounds = array<i64: 4, 1, 8>}, {pipeline_mode = #tpu.pipeline_mode<synchronous>, transform_indices = @transform_3, window_bounds = array<i64: 4, 32, 8>}, {pipeline_mode = #tpu.pipeline_mode<synchronous>, transform_indices = @transform_4, window_bounds = array<i64: 4, 1, 8>}, {pipeline_mode = #tpu.pipeline_mode<synchronous>, transform_indices = @transform_5, window_bounds = array<i64: 4, 32, 8>}, {pipeline_mode = #tpu.pipeline_mode<synchronous>, transform_indices = @transform_6, window_bounds = array<i64: 4, 1, 8>}, {pipeline_mode = #tpu.pipeline_mode<synchronous>, transform_indices = @transform_7, window_bounds = array<i64: 4, 8, 32>}, {pipeline_mode = #tpu.pipeline_mode<synchronous>, transform_indices = @transform_8, window_bounds = array<i64: 1, 32>}, {pipeline_mode = #tpu.pipeline_mode<synchronous>, transform_indices = @transform_9, window_bounds = array<i64: 1, 32>}, {pipeline_mode = #tpu.pipeline_mode<synchronous>, transform_indices = @transform_10, window_bounds = array<i64: 1, 32>}, {transform_indices = @transform_11, window_bounds = array<i64: 1, 8, 32>}]} {
    %c0 = arith.constant 0 : index
    %c0_0 = arith.constant 0 : index
    %c0_1 = arith.constant 0 : index
    %0 = vector.load %arg1[%c0, %c0_0, %c0_1] : memref<1x8x32xf32, #tpu.memory_space<vmem>>, vector<1x8x32xf32>
    %1 = vector.shape_cast %0 : vector<1x8x32xf32> to vector<8x32xf32>
    %2 = arith.truncf %1 : vector<8x32xf32> to vector<8x32xbf16>
    %cst = arith.constant 0.000000e+00 : f32
    %3 = vector.broadcast %cst : f32 to vector<8x32xf32>
    %c0_2 = arith.constant 0 : index
    %c0_3 = arith.constant 0 : index
    %c0_4 = arith.constant 0 : index
    %4 = vector.load %arg2[%c0_2, %c0_3, %c0_4] : memref<4x32x8xbf16, #tpu.memory_space<vmem>>, vector<1x32x8xbf16>
    %5 = vector.shape_cast %4 : vector<1x32x8xbf16> to vector<32x8xbf16>
    %cst_5 = arith.constant dense<0.000000e+00> : vector<8x8xf32>
    %6 = tpu.matmul %2, %5, %cst_5 {dimension_numbers = #tpu.dot_dimension_numbers<[1], [0], [0], [1], [0, 0, 1, 1], [], []>} : vector<8x32xbf16>, vector<32x8xbf16>, vector<8x8xf32> -> vector<8x8xf32>
    %c0_6 = arith.constant 0 : index
    %c0_7 = arith.constant 0 : index
    %c0_8 = arith.constant 0 : index
    %7 = vector.load %arg3[%c0_6, %c0_7, %c0_8] : memref<4x1x8xf32, #tpu.memory_space<vmem>>, vector<1x1x8xf32>
    %8 = vector.shape_cast %7 : vector<1x1x8xf32> to vector<1x8xf32>
    %9 = vector.broadcast %8 : vector<1x8xf32> to vector<8x8xf32>
    %10 = arith.addf %6, %9 : vector<8x8xf32>
    %c0_9 = arith.constant 0 : index
    %c0_10 = arith.constant 0 : index
    %c0_11 = arith.constant 0 : index
    %11 = vector.load %arg4[%c0_9, %c0_10, %c0_11] : memref<4x32x8xbf16, #tpu.memory_space<vmem>>, vector<1x32x8xbf16>
    %12 = vector.shape_cast %11 : vector<1x32x8xbf16> to vector<32x8xbf16>
    %cst_12 = arith.constant dense<0.000000e+00> : vector<8x8xf32>
    %13 = tpu.matmul %2, %12, %cst_12 {dimension_numbers = #tpu.dot_dimension_numbers<[1], [0], [0], [1], [0, 0, 1, 1], [], []>} : vector<8x32xbf16>, vector<32x8xbf16>, vector<8x8xf32> -> vector<8x8xf32>
    %c0_13 = arith.constant 0 : index
    %c0_14 = arith.constant 0 : index
    %c0_15 = arith.constant 0 : index
    %14 = vector.load %arg5[%c0_13, %c0_14, %c0_15] : memref<4x1x8xf32, #tpu.memory_space<vmem>>, vector<1x1x8xf32>
    %15 = vector.shape_cast %14 : vector<1x1x8xf32> to vector<1x8xf32>
    %16 = vector.broadcast %15 : vector<1x8xf32> to vector<8x8xf32>
    %17 = arith.addf %13, %16 : vector<8x8xf32>
    %c0_16 = arith.constant 0 : index
    %c0_17 = arith.constant 0 : index
    %c0_18 = arith.constant 0 : index
    %18 = vector.load %arg6[%c0_16, %c0_17, %c0_18] : memref<4x32x8xbf16, #tpu.memory_space<vmem>>, vector<1x32x8xbf16>
    %19 = vector.shape_cast %18 : vector<1x32x8xbf16> to vector<32x8xbf16>
    %cst_19 = arith.constant dense<0.000000e+00> : vector<8x8xf32>
    %20 = tpu.matmul %2, %19, %cst_19 {dimension_numbers = #tpu.dot_dimension_numbers<[1], [0], [0], [1], [0, 0, 1, 1], [], []>} : vector<8x32xbf16>, vector<32x8xbf16>, vector<8x8xf32> -> vector<8x8xf32>
    %c0_20 = arith.constant 0 : index
    %c0_21 = arith.constant 0 : index
    %c0_22 = arith.constant 0 : index
    %21 = vector.load %arg7[%c0_20, %c0_21, %c0_22] : memref<4x1x8xf32, #tpu.memory_space<vmem>>, vector<1x1x8xf32>
    %22 = vector.shape_cast %21 : vector<1x1x8xf32> to vector<1x8xf32>
    %23 = vector.broadcast %22 : vector<1x8xf32> to vector<8x8xf32>
    %24 = arith.addf %20, %23 : vector<8x8xf32>
    %cst_23 = arith.constant 0.353553385 : f32
    %25 = vector.broadcast %cst_23 : f32 to vector<8x8xf32>
    %26 = arith.mulf %10, %25 : vector<8x8xf32>
    %27 = arith.truncf %26 : vector<8x8xf32> to vector<8x8xbf16>
    %28 = arith.truncf %17 : vector<8x8xf32> to vector<8x8xbf16>
    %cst_24 = arith.constant dense<0.000000e+00> : vector<8x8xf32>
    %29 = tpu.matmul %27, %28, %cst_24 {dimension_numbers = #tpu.dot_dimension_numbers<[1], [1], [0], [0], [0, 0, 1, 0], [], []>} : vector<8x8xbf16>, vector<8x8xbf16>, vector<8x8xf32> -> vector<8x8xf32>
    %cst_25 = arith.constant dense<0xFF800000> : vector<8xf32>
    %30 = vector.multi_reduction <maximumf>, %29, %cst_25 [1] : vector<8x8xf32> to vector<8xf32>
    %31 = vector.shape_cast %30 : vector<8xf32> to vector<8x1xf32>
    %32 = vector.broadcast %31 : vector<8x1xf32> to vector<8x8xf32>
    %33 = arith.subf %29, %32 : vector<8x8xf32>
    %34 = math.exp %33 : vector<8x8xf32>
    %cst_26 = arith.constant dense<0.000000e+00> : vector<8xf32>
    %35 = vector.multi_reduction <add>, %34, %cst_26 [1] : vector<8x8xf32> to vector<8xf32>
    %36 = vector.shape_cast %35 : vector<8xf32> to vector<8x1xf32>
    %37 = tpu.reciprocal %36 {approx = true} : vector<8x1xf32> -> vector<8x1xf32>
    %38 = vector.broadcast %37 : vector<8x1xf32> to vector<8x8xf32>
    %39 = arith.mulf %34, %38 : vector<8x8xf32>
    %40 = arith.truncf %39 : vector<8x8xf32> to vector<8x8xbf16>
    %41 = arith.truncf %24 : vector<8x8xf32> to vector<8x8xbf16>
    %cst_27 = arith.constant dense<0.000000e+00> : vector<8x8xf32>
    %42 = tpu.matmul %40, %41, %cst_27 {dimension_numbers = #tpu.dot_dimension_numbers<[1], [0], [0], [1], [0, 0, 1, 1], [], []>} : vector<8x8xbf16>, vector<8x8xbf16>, vector<8x8xf32> -> vector<8x8xf32>
    %43 = arith.truncf %42 : vector<8x8xf32> to vector<8x8xbf16>
    %c0_28 = arith.constant 0 : index
    %c0_29 = arith.constant 0 : index
    %c0_30 = arith.constant 0 : index
    %44 = vector.load %arg8[%c0_28, %c0_29, %c0_30] : memref<4x8x32xbf16, #tpu.memory_space<vmem>>, vector<1x8x32xbf16>
    %45 = vector.shape_cast %44 : vector<1x8x32xbf16> to vector<8x32xbf16>
    %cst_31 = arith.constant dense<0.000000e+00> : vector<8x32xf32>
    %46 = tpu.matmul %43, %45, %cst_31 {dimension_numbers = #tpu.dot_dimension_numbers<[1], [0], [0], [1], [0, 0, 1, 1], [], []>} : vector<8x8xbf16>, vector<8x32xbf16>, vector<8x32xf32> -> vector<8x32xf32>
    %47 = arith.addf %3, %46 : vector<8x32xf32>
    %c1 = arith.constant 1 : index
    %c0_32 = arith.constant 0 : index
    %c0_33 = arith.constant 0 : index
    %48 = vector.load %arg2[%c1, %c0_32, %c0_33] : memref<4x32x8xbf16, #tpu.memory_space<vmem>>, vector<1x32x8xbf16>
    %49 = vector.shape_cast %48 : vector<1x32x8xbf16> to vector<32x8xbf16>
    %cst_34 = arith.constant dense<0.000000e+00> : vector<8x8xf32>
    %50 = tpu.matmul %2, %49, %cst_34 {dimension_numbers = #tpu.dot_dimension_numbers<[1], [0], [0], [1], [0, 0, 1, 1], [], []>} : vector<8x32xbf16>, vector<32x8xbf16>, vector<8x8xf32> -> vector<8x8xf32>
    %c1_35 = arith.constant 1 : index
    %c0_36 = arith.constant 0 : index
    %c0_37 = arith.constant 0 : index
    %51 = vector.load %arg3[%c1_35, %c0_36, %c0_37] : memref<4x1x8xf32, #tpu.memory_space<vmem>>, vector<1x1x8xf32>
    %52 = vector.shape_cast %51 : vector<1x1x8xf32> to vector<1x8xf32>
    %53 = vector.broadcast %52 : vector<1x8xf32> to vector<8x8xf32>
    %54 = arith.addf %50, %53 : vector<8x8xf32>
    %c1_38 = arith.constant 1 : index
    %c0_39 = arith.constant 0 : index
    %c0_40 = arith.constant 0 : index
    %55 = vector.load %arg4[%c1_38, %c0_39, %c0_40] : memref<4x32x8xbf16, #tpu.memory_space<vmem>>, vector<1x32x8xbf16>
    %56 = vector.shape_cast %55 : vector<1x32x8xbf16> to vector<32x8xbf16>
    %cst_41 = arith.constant dense<0.000000e+00> : vector<8x8xf32>
    %57 = tpu.matmul %2, %56, %cst_41 {dimension_numbers = #tpu.dot_dimension_numbers<[1], [0], [0], [1], [0, 0, 1, 1], [], []>} : vector<8x32xbf16>, vector<32x8xbf16>, vector<8x8xf32> -> vector<8x8xf32>
    %c1_42 = arith.constant 1 : index
    %c0_43 = arith.constant 0 : index
    %c0_44 = arith.constant 0 : index
    %58 = vector.load %arg5[%c1_42, %c0_43, %c0_44] : memref<4x1x8xf32, #tpu.memory_space<vmem>>, vector<1x1x8xf32>
    %59 = vector.shape_cast %58 : vector<1x1x8xf32> to vector<1x8xf32>
    %60 = vector.broadcast %59 : vector<1x8xf32> to vector<8x8xf32>
    %61 = arith.addf %57, %60 : vector<8x8xf32>
    %c1_45 = arith.constant 1 : index
    %c0_46 = arith.constant 0 : index
    %c0_47 = arith.constant 0 : index
    %62 = vector.load %arg6[%c1_45, %c0_46, %c0_47] : memref<4x32x8xbf16, #tpu.memory_space<vmem>>, vector<1x32x8xbf16>
    %63 = vector.shape_cast %62 : vector<1x32x8xbf16> to vector<32x8xbf16>
    %cst_48 = arith.constant dense<0.000000e+00> : vector<8x8xf32>
    %64 = tpu.matmul %2, %63, %cst_48 {dimension_numbers = #tpu.dot_dimension_numbers<[1], [0], [0], [1], [0, 0, 1, 1], [], []>} : vector<8x32xbf16>, vector<32x8xbf16>, vector<8x8xf32> -> vector<8x8xf32>
    %c1_49 = arith.constant 1 : index
    %c0_50 = arith.constant 0 : index
    %c0_51 = arith.constant 0 : index
    %65 = vector.load %arg7[%c1_49, %c0_50, %c0_51] : memref<4x1x8xf32, #tpu.memory_space<vmem>>, vector<1x1x8xf32>
    %66 = vector.shape_cast %65 : vector<1x1x8xf32> to vector<1x8xf32>
    %67 = vector.broadcast %66 : vector<1x8xf32> to vector<8x8xf32>
    %68 = arith.addf %64, %67 : vector<8x8xf32>
    %cst_52 = arith.constant 0.353553385 : f32
    %69 = vector.broadcast %cst_52 : f32 to vector<8x8xf32>
    %70 = arith.mulf %54, %69 : vector<8x8xf32>
    %71 = arith.truncf %70 : vector<8x8xf32> to vector<8x8xbf16>
    %72 = arith.truncf %61 : vector<8x8xf32> to vector<8x8xbf16>
    %cst_53 = arith.constant dense<0.000000e+00> : vector<8x8xf32>
    %73 = tpu.matmul %71, %72, %cst_53 {dimension_numbers = #tpu.dot_dimension_numbers<[1], [1], [0], [0], [0, 0, 1, 0], [], []>} : vector<8x8xbf16>, vector<8x8xbf16>, vector<8x8xf32> -> vector<8x8xf32>
    %cst_54 = arith.constant dense<0xFF800000> : vector<8xf32>
    %74 = vector.multi_reduction <maximumf>, %73, %cst_54 [1] : vector<8x8xf32> to vector<8xf32>
    %75 = vector.shape_cast %74 : vector<8xf32> to vector<8x1xf32>
    %76 = vector.broadcast %75 : vector<8x1xf32> to vector<8x8xf32>
    %77 = arith.subf %73, %76 : vector<8x8xf32>
    %78 = math.exp %77 : vector<8x8xf32>
    %cst_55 = arith.constant dense<0.000000e+00> : vector<8xf32>
    %79 = vector.multi_reduction <add>, %78, %cst_55 [1] : vector<8x8xf32> to vector<8xf32>
    %80 = vector.shape_cast %79 : vector<8xf32> to vector<8x1xf32>
    %81 = tpu.reciprocal %80 {approx = true} : vector<8x1xf32> -> vector<8x1xf32>
    %82 = vector.broadcast %81 : vector<8x1xf32> to vector<8x8xf32>
    %83 = arith.mulf %78, %82 : vector<8x8xf32>
    %84 = arith.truncf %83 : vector<8x8xf32> to vector<8x8xbf16>
    %85 = arith.truncf %68 : vector<8x8xf32> to vector<8x8xbf16>
    %cst_56 = arith.constant dense<0.000000e+00> : vector<8x8xf32>
    %86 = tpu.matmul %84, %85, %cst_56 {dimension_numbers = #tpu.dot_dimension_numbers<[1], [0], [0], [1], [0, 0, 1, 1], [], []>} : vector<8x8xbf16>, vector<8x8xbf16>, vector<8x8xf32> -> vector<8x8xf32>
    %87 = arith.truncf %86 : vector<8x8xf32> to vector<8x8xbf16>
    %c1_57 = arith.constant 1 : index
    %c0_58 = arith.constant 0 : index
    %c0_59 = arith.constant 0 : index
    %88 = vector.load %arg8[%c1_57, %c0_58, %c0_59] : memref<4x8x32xbf16, #tpu.memory_space<vmem>>, vector<1x8x32xbf16>
    %89 = vector.shape_cast %88 : vector<1x8x32xbf16> to vector<8x32xbf16>
    %cst_60 = arith.constant dense<0.000000e+00> : vector<8x32xf32>
    %90 = tpu.matmul %87, %89, %cst_60 {dimension_numbers = #tpu.dot_dimension_numbers<[1], [0], [0], [1], [0, 0, 1, 1], [], []>} : vector<8x8xbf16>, vector<8x32xbf16>, vector<8x32xf32> -> vector<8x32xf32>
    %91 = arith.addf %47, %90 : vector<8x32xf32>
    %c2 = arith.constant 2 : index
    %c0_61 = arith.constant 0 : index
    %c0_62 = arith.constant 0 : index
    %92 = vector.load %arg2[%c2, %c0_61, %c0_62] : memref<4x32x8xbf16, #tpu.memory_space<vmem>>, vector<1x32x8xbf16>
    %93 = vector.shape_cast %92 : vector<1x32x8xbf16> to vector<32x8xbf16>
    %cst_63 = arith.constant dense<0.000000e+00> : vector<8x8xf32>
    %94 = tpu.matmul %2, %93, %cst_63 {dimension_numbers = #tpu.dot_dimension_numbers<[1], [0], [0], [1], [0, 0, 1, 1], [], []>} : vector<8x32xbf16>, vector<32x8xbf16>, vector<8x8xf32> -> vector<8x8xf32>
    %c2_64 = arith.constant 2 : index
    %c0_65 = arith.constant 0 : index
    %c0_66 = arith.constant 0 : index
    %95 = vector.load %arg3[%c2_64, %c0_65, %c0_66] : memref<4x1x8xf32, #tpu.memory_space<vmem>>, vector<1x1x8xf32>
    %96 = vector.shape_cast %95 : vector<1x1x8xf32> to vector<1x8xf32>
    %97 = vector.broadcast %96 : vector<1x8xf32> to vector<8x8xf32>
    %98 = arith.addf %94, %97 : vector<8x8xf32>
    %c2_67 = arith.constant 2 : index
    %c0_68 = arith.constant 0 : index
    %c0_69 = arith.constant 0 : index
    %99 = vector.load %arg4[%c2_67, %c0_68, %c0_69] : memref<4x32x8xbf16, #tpu.memory_space<vmem>>, vector<1x32x8xbf16>
    %100 = vector.shape_cast %99 : vector<1x32x8xbf16> to vector<32x8xbf16>
    %cst_70 = arith.constant dense<0.000000e+00> : vector<8x8xf32>
    %101 = tpu.matmul %2, %100, %cst_70 {dimension_numbers = #tpu.dot_dimension_numbers<[1], [0], [0], [1], [0, 0, 1, 1], [], []>} : vector<8x32xbf16>, vector<32x8xbf16>, vector<8x8xf32> -> vector<8x8xf32>
    %c2_71 = arith.constant 2 : index
    %c0_72 = arith.constant 0 : index
    %c0_73 = arith.constant 0 : index
    %102 = vector.load %arg5[%c2_71, %c0_72, %c0_73] : memref<4x1x8xf32, #tpu.memory_space<vmem>>, vector<1x1x8xf32>
    %103 = vector.shape_cast %102 : vector<1x1x8xf32> to vector<1x8xf32>
    %104 = vector.broadcast %103 : vector<1x8xf32> to vector<8x8xf32>
    %105 = arith.addf %101, %104 : vector<8x8xf32>
    %c2_74 = arith.constant 2 : index
    %c0_75 = arith.constant 0 : index
    %c0_76 = arith.constant 0 : index
    %106 = vector.load %arg6[%c2_74, %c0_75, %c0_76] : memref<4x32x8xbf16, #tpu.memory_space<vmem>>, vector<1x32x8xbf16>
    %107 = vector.shape_cast %106 : vector<1x32x8xbf16> to vector<32x8xbf16>
    %cst_77 = arith.constant dense<0.000000e+00> : vector<8x8xf32>
    %108 = tpu.matmul %2, %107, %cst_77 {dimension_numbers = #tpu.dot_dimension_numbers<[1], [0], [0], [1], [0, 0, 1, 1], [], []>} : vector<8x32xbf16>, vector<32x8xbf16>, vector<8x8xf32> -> vector<8x8xf32>
    %c2_78 = arith.constant 2 : index
    %c0_79 = arith.constant 0 : index
    %c0_80 = arith.constant 0 : index
    %109 = vector.load %arg7[%c2_78, %c0_79, %c0_80] : memref<4x1x8xf32, #tpu.memory_space<vmem>>, vector<1x1x8xf32>
    %110 = vector.shape_cast %109 : vector<1x1x8xf32> to vector<1x8xf32>
    %111 = vector.broadcast %110 : vector<1x8xf32> to vector<8x8xf32>
    %112 = arith.addf %108, %111 : vector<8x8xf32>
    %cst_81 = arith.constant 0.353553385 : f32
    %113 = vector.broadcast %cst_81 : f32 to vector<8x8xf32>
    %114 = arith.mulf %98, %113 : vector<8x8xf32>
    %115 = arith.truncf %114 : vector<8x8xf32> to vector<8x8xbf16>
    %116 = arith.truncf %105 : vector<8x8xf32> to vector<8x8xbf16>
    %cst_82 = arith.constant dense<0.000000e+00> : vector<8x8xf32>
    %117 = tpu.matmul %115, %116, %cst_82 {dimension_numbers = #tpu.dot_dimension_numbers<[1], [1], [0], [0], [0, 0, 1, 0], [], []>} : vector<8x8xbf16>, vector<8x8xbf16>, vector<8x8xf32> -> vector<8x8xf32>
    %cst_83 = arith.constant dense<0xFF800000> : vector<8xf32>
    %118 = vector.multi_reduction <maximumf>, %117, %cst_83 [1] : vector<8x8xf32> to vector<8xf32>
    %119 = vector.shape_cast %118 : vector<8xf32> to vector<8x1xf32>
    %120 = vector.broadcast %119 : vector<8x1xf32> to vector<8x8xf32>
    %121 = arith.subf %117, %120 : vector<8x8xf32>
    %122 = math.exp %121 : vector<8x8xf32>
    %cst_84 = arith.constant dense<0.000000e+00> : vector<8xf32>
    %123 = vector.multi_reduction <add>, %122, %cst_84 [1] : vector<8x8xf32> to vector<8xf32>
    %124 = vector.shape_cast %123 : vector<8xf32> to vector<8x1xf32>
    %125 = tpu.reciprocal %124 {approx = true} : vector<8x1xf32> -> vector<8x1xf32>
    %126 = vector.broadcast %125 : vector<8x1xf32> to vector<8x8xf32>
    %127 = arith.mulf %122, %126 : vector<8x8xf32>
    %128 = arith.truncf %127 : vector<8x8xf32> to vector<8x8xbf16>
    %129 = arith.truncf %112 : vector<8x8xf32> to vector<8x8xbf16>
    %cst_85 = arith.constant dense<0.000000e+00> : vector<8x8xf32>
    %130 = tpu.matmul %128, %129, %cst_85 {dimension_numbers = #tpu.dot_dimension_numbers<[1], [0], [0], [1], [0, 0, 1, 1], [], []>} : vector<8x8xbf16>, vector<8x8xbf16>, vector<8x8xf32> -> vector<8x8xf32>
    %131 = arith.truncf %130 : vector<8x8xf32> to vector<8x8xbf16>
    %c2_86 = arith.constant 2 : index
    %c0_87 = arith.constant 0 : index
    %c0_88 = arith.constant 0 : index
    %132 = vector.load %arg8[%c2_86, %c0_87, %c0_88] : memref<4x8x32xbf16, #tpu.memory_space<vmem>>, vector<1x8x32xbf16>
    %133 = vector.shape_cast %132 : vector<1x8x32xbf16> to vector<8x32xbf16>
    %cst_89 = arith.constant dense<0.000000e+00> : vector<8x32xf32>
    %134 = tpu.matmul %131, %133, %cst_89 {dimension_numbers = #tpu.dot_dimension_numbers<[1], [0], [0], [1], [0, 0, 1, 1], [], []>} : vector<8x8xbf16>, vector<8x32xbf16>, vector<8x32xf32> -> vector<8x32xf32>
    %135 = arith.addf %91, %134 : vector<8x32xf32>
    %c3 = arith.constant 3 : index
    %c0_90 = arith.constant 0 : index
    %c0_91 = arith.constant 0 : index
    %136 = vector.load %arg2[%c3, %c0_90, %c0_91] : memref<4x32x8xbf16, #tpu.memory_space<vmem>>, vector<1x32x8xbf16>
    %137 = vector.shape_cast %136 : vector<1x32x8xbf16> to vector<32x8xbf16>
    %cst_92 = arith.constant dense<0.000000e+00> : vector<8x8xf32>
    %138 = tpu.matmul %2, %137, %cst_92 {dimension_numbers = #tpu.dot_dimension_numbers<[1], [0], [0], [1], [0, 0, 1, 1], [], []>} : vector<8x32xbf16>, vector<32x8xbf16>, vector<8x8xf32> -> vector<8x8xf32>
    %c3_93 = arith.constant 3 : index
    %c0_94 = arith.constant 0 : index
    %c0_95 = arith.constant 0 : index
    %139 = vector.load %arg3[%c3_93, %c0_94, %c0_95] : memref<4x1x8xf32, #tpu.memory_space<vmem>>, vector<1x1x8xf32>
    %140 = vector.shape_cast %139 : vector<1x1x8xf32> to vector<1x8xf32>
    %141 = vector.broadcast %140 : vector<1x8xf32> to vector<8x8xf32>
    %142 = arith.addf %138, %141 : vector<8x8xf32>
    %c3_96 = arith.constant 3 : index
    %c0_97 = arith.constant 0 : index
    %c0_98 = arith.constant 0 : index
    %143 = vector.load %arg4[%c3_96, %c0_97, %c0_98] : memref<4x32x8xbf16, #tpu.memory_space<vmem>>, vector<1x32x8xbf16>
    %144 = vector.shape_cast %143 : vector<1x32x8xbf16> to vector<32x8xbf16>
    %cst_99 = arith.constant dense<0.000000e+00> : vector<8x8xf32>
    %145 = tpu.matmul %2, %144, %cst_99 {dimension_numbers = #tpu.dot_dimension_numbers<[1], [0], [0], [1], [0, 0, 1, 1], [], []>} : vector<8x32xbf16>, vector<32x8xbf16>, vector<8x8xf32> -> vector<8x8xf32>
    %c3_100 = arith.constant 3 : index
    %c0_101 = arith.constant 0 : index
    %c0_102 = arith.constant 0 : index
    %146 = vector.load %arg5[%c3_100, %c0_101, %c0_102] : memref<4x1x8xf32, #tpu.memory_space<vmem>>, vector<1x1x8xf32>
    %147 = vector.shape_cast %146 : vector<1x1x8xf32> to vector<1x8xf32>
    %148 = vector.broadcast %147 : vector<1x8xf32> to vector<8x8xf32>
    %149 = arith.addf %145, %148 : vector<8x8xf32>
    %c3_103 = arith.constant 3 : index
    %c0_104 = arith.constant 0 : index
    %c0_105 = arith.constant 0 : index
    %150 = vector.load %arg6[%c3_103, %c0_104, %c0_105] : memref<4x32x8xbf16, #tpu.memory_space<vmem>>, vector<1x32x8xbf16>
    %151 = vector.shape_cast %150 : vector<1x32x8xbf16> to vector<32x8xbf16>
    %cst_106 = arith.constant dense<0.000000e+00> : vector<8x8xf32>
    %152 = tpu.matmul %2, %151, %cst_106 {dimension_numbers = #tpu.dot_dimension_numbers<[1], [0], [0], [1], [0, 0, 1, 1], [], []>} : vector<8x32xbf16>, vector<32x8xbf16>, vector<8x8xf32> -> vector<8x8xf32>
    %c3_107 = arith.constant 3 : index
    %c0_108 = arith.constant 0 : index
    %c0_109 = arith.constant 0 : index
    %153 = vector.load %arg7[%c3_107, %c0_108, %c0_109] : memref<4x1x8xf32, #tpu.memory_space<vmem>>, vector<1x1x8xf32>
    %154 = vector.shape_cast %153 : vector<1x1x8xf32> to vector<1x8xf32>
    %155 = vector.broadcast %154 : vector<1x8xf32> to vector<8x8xf32>
    %156 = arith.addf %152, %155 : vector<8x8xf32>
    %cst_110 = arith.constant 0.353553385 : f32
    %157 = vector.broadcast %cst_110 : f32 to vector<8x8xf32>
    %158 = arith.mulf %142, %157 : vector<8x8xf32>
    %159 = arith.truncf %158 : vector<8x8xf32> to vector<8x8xbf16>
    %160 = arith.truncf %149 : vector<8x8xf32> to vector<8x8xbf16>
    %cst_111 = arith.constant dense<0.000000e+00> : vector<8x8xf32>
    %161 = tpu.matmul %159, %160, %cst_111 {dimension_numbers = #tpu.dot_dimension_numbers<[1], [1], [0], [0], [0, 0, 1, 0], [], []>} : vector<8x8xbf16>, vector<8x8xbf16>, vector<8x8xf32> -> vector<8x8xf32>
    %cst_112 = arith.constant dense<0xFF800000> : vector<8xf32>
    %162 = vector.multi_reduction <maximumf>, %161, %cst_112 [1] : vector<8x8xf32> to vector<8xf32>
    %163 = vector.shape_cast %162 : vector<8xf32> to vector<8x1xf32>
    %164 = vector.broadcast %163 : vector<8x1xf32> to vector<8x8xf32>
    %165 = arith.subf %161, %164 : vector<8x8xf32>
    %166 = math.exp %165 : vector<8x8xf32>
    %cst_113 = arith.constant dense<0.000000e+00> : vector<8xf32>
    %167 = vector.multi_reduction <add>, %166, %cst_113 [1] : vector<8x8xf32> to vector<8xf32>
    %168 = vector.shape_cast %167 : vector<8xf32> to vector<8x1xf32>
    %169 = tpu.reciprocal %168 {approx = true} : vector<8x1xf32> -> vector<8x1xf32>
    %170 = vector.broadcast %169 : vector<8x1xf32> to vector<8x8xf32>
    %171 = arith.mulf %166, %170 : vector<8x8xf32>
    %172 = arith.truncf %171 : vector<8x8xf32> to vector<8x8xbf16>
    %173 = arith.truncf %156 : vector<8x8xf32> to vector<8x8xbf16>
    %cst_114 = arith.constant dense<0.000000e+00> : vector<8x8xf32>
    %174 = tpu.matmul %172, %173, %cst_114 {dimension_numbers = #tpu.dot_dimension_numbers<[1], [0], [0], [1], [0, 0, 1, 1], [], []>} : vector<8x8xbf16>, vector<8x8xbf16>, vector<8x8xf32> -> vector<8x8xf32>
    %175 = arith.truncf %174 : vector<8x8xf32> to vector<8x8xbf16>
    %c3_115 = arith.constant 3 : index
    %c0_116 = arith.constant 0 : index
    %c0_117 = arith.constant 0 : index
    %176 = vector.load %arg8[%c3_115, %c0_116, %c0_117] : memref<4x8x32xbf16, #tpu.memory_space<vmem>>, vector<1x8x32xbf16>
    %177 = vector.shape_cast %176 : vector<1x8x32xbf16> to vector<8x32xbf16>
    %cst_118 = arith.constant dense<0.000000e+00> : vector<8x32xf32>
    %178 = tpu.matmul %175, %177, %cst_118 {dimension_numbers = #tpu.dot_dimension_numbers<[1], [0], [0], [1], [0, 0, 1, 1], [], []>} : vector<8x8xbf16>, vector<8x32xbf16>, vector<8x32xf32> -> vector<8x32xf32>
    %179 = arith.addf %135, %178 : vector<8x32xf32>
    %180 = arith.addf %1, %179 : vector<8x32xf32>
    %c0_119 = arith.constant 0 : index
    %c0_120 = arith.constant 0 : index
    %181 = vector.load %arg9[%c0_119, %c0_120] : memref<1x32xf32, #tpu.memory_space<vmem>>, vector<1x32xf32>
    %182 = vector.broadcast %181 : vector<1x32xf32> to vector<8x32xf32>
    %183 = arith.addf %180, %182 : vector<8x32xf32>
    %cst_121 = arith.constant dense<0.000000e+00> : vector<8xf32>
    %184 = vector.multi_reduction <add>, %183, %cst_121 [1] : vector<8x32xf32> to vector<8xf32>
    %185 = vector.shape_cast %184 : vector<8xf32> to vector<8x1xf32>
    %cst_122 = arith.constant 3.200000e+01 : f32
    %186 = vector.broadcast %cst_122 : f32 to vector<8x1xf32>
    %187 = arith.divf %185, %186 : vector<8x1xf32>
    %188 = vector.broadcast %187 : vector<8x1xf32> to vector<8x32xf32>
    %189 = arith.subf %183, %188 : vector<8x32xf32>
    %190 = arith.mulf %189, %189 : vector<8x32xf32>
    %cst_123 = arith.constant dense<0.000000e+00> : vector<8xf32>
    %191 = vector.multi_reduction <add>, %190, %cst_123 [1] : vector<8x32xf32> to vector<8xf32>
    %192 = vector.shape_cast %191 : vector<8xf32> to vector<8x1xf32>
    %cst_124 = arith.constant 3.200000e+01 : f32
    %193 = vector.broadcast %cst_124 : f32 to vector<8x1xf32>
    %194 = arith.divf %192, %193 : vector<8x1xf32>
    %195 = vector.broadcast %187 : vector<8x1xf32> to vector<8x32xf32>
    %196 = arith.subf %183, %195 : vector<8x32xf32>
    %cst_125 = arith.constant 9.99999974E-6 : f32
    %197 = vector.broadcast %cst_125 : f32 to vector<8x1xf32>
    %198 = arith.addf %194, %197 : vector<8x1xf32>
    %199 = math.rsqrt %198 : vector<8x1xf32>
    %200 = vector.broadcast %199 : vector<8x1xf32> to vector<8x32xf32>
    %201 = arith.mulf %196, %200 : vector<8x32xf32>
    %c0_126 = arith.constant 0 : index
    %c0_127 = arith.constant 0 : index
    %202 = vector.load %arg10[%c0_126, %c0_127] : memref<1x32xf32, #tpu.memory_space<vmem>>, vector<1x32xf32>
    %203 = vector.broadcast %202 : vector<1x32xf32> to vector<8x32xf32>
    %204 = arith.mulf %201, %203 : vector<8x32xf32>
    %c0_128 = arith.constant 0 : index
    %c0_129 = arith.constant 0 : index
    %205 = vector.load %arg11[%c0_128, %c0_129] : memref<1x32xf32, #tpu.memory_space<vmem>>, vector<1x32xf32>
    %206 = vector.broadcast %205 : vector<1x32xf32> to vector<8x32xf32>
    %207 = arith.addf %204, %206 : vector<8x32xf32>
    %c0_130 = arith.constant 0 : index
    %c0_131 = arith.constant 0 : index
    %c0_132 = arith.constant 0 : index
    %208 = vector.load %arg12[%c0_130, %c0_131, %c0_132] : memref<1x8x32xf32, #tpu.memory_space<vmem>>, vector<1x8x32xf32>
    %209 = vector.shape_cast %208 : vector<1x8x32xf32> to vector<8x32xf32>
    %210 = vector.shape_cast %207 : vector<8x32xf32> to vector<1x8x32xf32>
    tpu.vector_store %arg12[%c0_130, %c0_131, %c0_132], %210 {strides = array<i32>} : memref<1x8x32xf32, #tpu.memory_space<vmem>>, vector<1x8x32xf32>,
    return
  }
  func.func @transform_0(%arg0: i32) -> (i32, i32, i32) {
    %c0_i32 = arith.constant 0 : i32
    %c0_i32_0 = arith.constant 0 : i32
    %c0_i32_1 = arith.constant 0 : i32
    return %arg0, %c0_i32, %c0_i32_0 : i32, i32, i32
  }
  func.func @transform_1(%arg0: i32) -> (i32, i32, i32) {
    %c0_i32 = arith.constant 0 : i32
    %c0_i32_0 = arith.constant 0 : i32
    %c0_i32_1 = arith.constant 0 : i32
    %c0_i32_2 = arith.constant 0 : i32
    return %c0_i32, %c0_i32_0, %c0_i32_1 : i32, i32, i32
  }
  func.func @transform_2(%arg0: i32) -> (i32, i32, i32) {
    %c0_i32 = arith.constant 0 : i32
    %c0_i32_0 = arith.constant 0 : i32
    %c0_i32_1 = arith.constant 0 : i32
    %c0_i32_2 = arith.constant 0 : i32
    return %c0_i32, %c0_i32_0, %c0_i32_1 : i32, i32, i32
  }
  func.func @transform_3(%arg0: i32) -> (i32, i32, i32) {
    %c0_i32 = arith.constant 0 : i32
    %c0_i32_0 = arith.constant 0 : i32
    %c0_i32_1 = arith.constant 0 : i32
    %c0_i32_2 = arith.constant 0 : i32
    return %c0_i32, %c0_i32_0, %c0_i32_1 : i32, i32, i32
  }
  func.func @transform_4(%arg0: i32) -> (i32, i32, i32) {
    %c0_i32 = arith.constant 0 : i32
    %c0_i32_0 = arith.constant 0 : i32
    %c0_i32_1 = arith.constant 0 : i32
    %c0_i32_2 = arith.constant 0 : i32
    return %c0_i32, %c0_i32_0, %c0_i32_1 : i32, i32, i32
  }
  func.func @transform_5(%arg0: i32) -> (i32, i32, i32) {
    %c0_i32 = arith.constant 0 : i32
    %c0_i32_0 = arith.constant 0 : i32
    %c0_i32_1 = arith.constant 0 : i32
    %c0_i32_2 = arith.constant 0 : i32
    return %c0_i32, %c0_i32_0, %c0_i32_1 : i32, i32, i32
  }
  func.func @transform_6(%arg0: i32) -> (i32, i32, i32) {
    %c0_i32 = arith.constant 0 : i32
    %c0_i32_0 = arith.constant 0 : i32
    %c0_i32_1 = arith.constant 0 : i32
    %c0_i32_2 = arith.constant 0 : i32
    return %c0_i32, %c0_i32_0, %c0_i32_1 : i32, i32, i32
  }
  func.func @transform_7(%arg0: i32) -> (i32, i32, i32) {
    %c0_i32 = arith.constant 0 : i32
    %c0_i32_0 = arith.constant 0 : i32
    %c0_i32_1 = arith.constant 0 : i32
    %c0_i32_2 = arith.constant 0 : i32
    return %c0_i32, %c0_i32_0, %c0_i32_1 : i32, i32, i32
  }
  func.func @transform_8(%arg0: i32) -> (i32, i32) {
    %c0_i32 = arith.constant 0 : i32
    %c0_i32_0 = arith.constant 0 : i32
    %c0_i32_1 = arith.constant 0 : i32
    return %c0_i32, %c0_i32_0 : i32, i32
  }
  func.func @transform_9(%arg0: i32) -> (i32, i32) {
    %c0_i32 = arith.constant 0 : i32
    %c0_i32_0 = arith.constant 0 : i32
    %c0_i32_1 = arith.constant 0 : i32
    return %c0_i32, %c0_i32_0 : i32, i32
  }
  func.func @transform_10(%arg0: i32) -> (i32, i32) {
    %c0_i32 = arith.constant 0 : i32
    %c0_i32_0 = arith.constant 0 : i32
    %c0_i32_1 = arith.constant 0 : i32
    return %c0_i32, %c0_i32_0 : i32, i32
  }
  func.func @transform_11(%arg0: i32) -> (i32, i32, i32) {
    %c0_i32 = arith.constant 0 : i32
    %c0_i32_0 = arith.constant 0 : i32
    %c0_i32_1 = arith.constant 0 : i32
    return %arg0, %c0_i32, %c0_i32_0 : i32, i32, i32
  }
}

</mosaic_0001>

<llo_original>
// kernel: pretraining_model_forward.9
$region0: #{pretraining_model_forward.9}
  #allocation0 [shape = 'u32[]', space=smem, size = 0x4, offset = 0x4, fixed_abs, tag = 'smem constant byte address 0x4 - core index']
  #allocation1 [shape = 'u32[144,128]{1,0:T(1,128)}', space=vmem, size = 0x12000, scoped, tag = 'internal scratch']
  %s0 = inlined_call_operand.vmem [shape: f32[16,32], index: 0, kind: input, shape index: {}]
  %s1 = inlined_call_operand.vmem [shape: bf16[32,128], index: 1, kind: input, shape index: {}]
  %s2 = inlined_call_operand.vmem [shape: f32[1,128], index: 2, kind: input, shape index: {}]
  %s3 = inlined_call_operand.vmem [shape: f32[16,128], index: 3, kind: output, shape index: {}]
  %s4 = sld [smem:[#allocation0]]
  $region22: #{pretraining_model_forward.9} parent=0
    _
  %s6 = ssub.s32 1, %s4
  %s7 = scalar_select 0, %s6, %s4
  // Predicated region
  $region2: #{pretraining_model_forward.9} parent=0 // pred_check
    _
  $region3: #{pretraining_model_forward.9} parent=0 // pred_check_branch
    %9 = sbr.rel (0) target = $region5
  $region4: #{pretraining_model_forward.9} parent=0 // pred_region
    _
  $region5: #{pretraining_model_forward.9} parent=0 // pred_fallthru
    _
  // Predicated region
  $region6: #{pretraining_model_forward.9} parent=0 // pred_check
    _
  $region7: #{pretraining_model_forward.9} parent=0 // pred_check_branch
    %11 = sbr.rel (0) target = $region9
  $region8: #{pretraining_model_forward.9} parent=0 // pred_region
    _
  $region9: #{pretraining_model_forward.9} parent=0 // pred_fallthru
    _
  // Predicated region
  $region10: #{pretraining_model_forward.9} parent=0 // pred_check
    _
  $region11: #{pretraining_model_forward.9} parent=0 // pred_check_branch
    %13 = sbr.rel (0) target = $region13
  $region12: #{pretraining_model_forward.9} parent=0 // pred_region
    _
  $region13: #{pretraining_model_forward.9} parent=0 // pred_fallthru
    _
  %v15 = vld [vmem:[%s0] sm:$0xff]
  %v16 = vld [vmem:[%s0 + $0x8] sm:$0xff]
  %v17 = vpack.c.bf16 %v16, %v15
  %v18 = vld [vmem:[%s1] sm:$0xf]
  %v19 = vld [vmem:[%s1 + $0x4] sm:$0xf]
  %v20 = vld [vmem:[%s1 + $0x8] sm:$0xf]
  %v21 = vld [vmem:[%s1 + $0xc] sm:$0xf]
  %v22 = vld [vmem:[%s2] sm:$0x1]
  %v24 = vlaneseq
  %v25 = vshrl.u32 %v24, 7
  %v26 = vsub.s32 0, %v25
  %v27 = vrot.slane %v22, %v26
  %v33 = vunpack.c.l.b16 %v18
  %v34 = vunpack.c.l.b16 %v19
  %v35 = vunpack.c.l.b16 %v20
  %v36 = vunpack.c.l.b16 %v21
  %v37 = vpack.c.b16 %v34, %v33
  %v38 = vpack.c.b16 %v36, %v35
  %vm41 = vcmask 261120
  %v43 = vsel %vm41, %v17, 0
  %45 = vmatprep.subr.bf16.mxu0 0
  %46 = vmatpush1.bf16.msra.mxu0 0
  %47 = vmatprep.subr.bf16.mxu0 0
  %48 = vmatpush1.bf16.msra.mxu0 0
  %49 = vmatprep.subr.bf16.mxu0 0
  %50 = vmatpush1.bf16.msra.mxu0 0
  %51 = vmatprep.subr.bf16.mxu0 0
  %52 = vmatpush1.bf16.msra.mxu0 0
  %53 = vmatprep.subr.bf16.mxu0 0
  %54 = vmatpush1.bf16.msra.mxu0 0
  %55 = vmatprep.subr.bf16.mxu0 0
  %56 = vmatpush1.bf16.msra.mxu0 0
  %57 = vmatprep.subr.bf16.mxu0 0
  %58 = vmatpush1.bf16.msra.mxu0 %v38
  %59 = vmatprep.subr.bf16.mxu0 0
  %60 = vmatpush1.bf16.msra.mxu0 %v37
  %61 = vmatprep.subr.bf16.mxu0 0
  %62 = vmatpush2.bf16.msra.mxu0 0
  %63 = vmatprep.subr.bf16.mxu0 0
  %64 = vmatpush2.bf16.msra.mxu0 0
  %65 = vmatprep.subr.bf16.mxu0 0
  %66 = vmatpush2.bf16.msra.mxu0 0
  %67 = vmatprep.subr.bf16.mxu0 0
  %68 = vmatpush2.bf16.msra.mxu0 0
  %69 = vmatprep.subr.bf16.mxu0 0
  %70 = vmatpush2.bf16.msra.mxu0 0
  %71 = vmatprep.subr.bf16.mxu0 0
  %72 = vmatpush2.bf16.msra.mxu0 0
  %73 = vmatprep.subr.bf16.mxu0 0
  %74 = vmatpush2.bf16.msra.mxu0 0
  %75 = vmatprep.subr.bf16.mxu0 0
  %76 = vmatpush2.bf16.msra.mxu0 0
  %77 = vmatprep.mubr.bf16.mxu0 0
  %78 = vmatmul.mubr.bf16.gmra.mxu0 %v43
  %v79 = vpop.f32.mrf.mxu0
  %v80 = vadd.f32 %v27, %v79
  %v81 = vpop.f32.mrf.mxu0
  %v82 = vpop.f32.mrf.mxu0
  %v83 = vadd.f32 %v27, %v82
  %v84 = vpop.f32.mrf.mxu0
  %85 = vdwg.mxu0
  %86 = vst [vmem:[%s3] sm:$0xff] %v80
  %87 = vst [vmem:[%s3 + $0x8] sm:$0xff] %v83
  // Predicated region
  $region14: #{pretraining_model_forward.9} parent=0 // pred_check
    _
  $region15: #{pretraining_model_forward.9} parent=0 // pred_check_branch
    %89 = sbr.rel (0) target = $region17
  $region16: #{pretraining_model_forward.9} parent=0 // pred_region
    _
  $region17: #{pretraining_model_forward.9} parent=0 // pred_fallthru
    _
  // Predicated region
  $region18: #{pretraining_model_forward.9} parent=0 // pred_check
    _
  $region19: #{pretraining_model_forward.9} parent=0 // pred_check_branch
    %91 = sbr.rel (0) target = $region21
  $region20: #{pretraining_model_forward.9} parent=0 // pred_region
    _
  $region21: #{pretraining_model_forward.9} parent=0 // pred_fallthru
    _

// kernel: pretraining_model_forward.6
$region0: #{pretraining_model_forward.6}
  #allocation0 [shape = 'u32[]', space=smem, size = 0x4, offset = 0x4, fixed_abs, tag = 'smem constant byte address 0x4 - core index']
  #allocation1 [shape = 'u32[144,128]{1,0:T(1,128)}', space=vmem, size = 0x12000, scoped, tag = 'internal scratch']
  %s0 = inlined_call_operand.vmem [shape: f32[16,32], index: 0, kind: input, shape index: {}]
  %s1 = inlined_call_operand.vmem [shape: bf16[32,64], index: 1, kind: input, shape index: {}]
  %s2 = inlined_call_operand.vmem [shape: f32[1,64], index: 2, kind: input, shape index: {}]
  %s3 = inlined_call_operand.vmem [shape: bf16[64,32], index: 3, kind: input, shape index: {}]
  %s4 = inlined_call_operand.vmem [shape: f32[1,32], index: 4, kind: input, shape index: {}]
  %s5 = inlined_call_operand.vmem [shape: f32[1,32], index: 5, kind: input, shape index: {}]
  %s6 = inlined_call_operand.vmem [shape: f32[1,32], index: 6, kind: input, shape index: {}]
  %s7 = inlined_call_operand.vmem [shape: f32[16,32], index: 7, kind: output, shape index: {}]
  %s8 = sld [smem:[#allocation0]]
  $region38: #{pretraining_model_forward.6} parent=0
    _
  %s10 = ssub.s32 1, %s8
  %s11 = scalar_select 0, %s10, %s8
  // Predicated region
  $region2: #{pretraining_model_forward.6} parent=0 // pred_check
    _
  $region3: #{pretraining_model_forward.6} parent=0 // pred_check_branch
    %13 = sbr.rel (0) target = $region5
  $region4: #{pretraining_model_forward.6} parent=0 // pred_region
    _
  $region5: #{pretraining_model_forward.6} parent=0 // pred_fallthru
    _
  // Predicated region
  $region6: #{pretraining_model_forward.6} parent=0 // pred_check
    _
  $region7: #{pretraining_model_forward.6} parent=0 // pred_check_branch
    %15 = sbr.rel (0) target = $region9
  $region8: #{pretraining_model_forward.6} parent=0 // pred_region
    _
  $region9: #{pretraining_model_forward.6} parent=0 // pred_fallthru
    _
  // Predicated region
  $region10: #{pretraining_model_forward.6} parent=0 // pred_check
    _
  $region11: #{pretraining_model_forward.6} parent=0 // pred_check_branch
    %17 = sbr.rel (0) target = $region13
  $region12: #{pretraining_model_forward.6} parent=0 // pred_region
    _
  $region13: #{pretraining_model_forward.6} parent=0 // pred_fallthru
    _
  // Predicated region
  $region14: #{pretraining_model_forward.6} parent=0 // pred_check
    _
  $region15: #{pretraining_model_forward.6} parent=0 // pred_check_branch
    %19 = sbr.rel (0) target = $region17
  $region16: #{pretraining_model_forward.6} parent=0 // pred_region
    _
  $region17: #{pretraining_model_forward.6} parent=0 // pred_fallthru
    _
  // Predicated region
  $region18: #{pretraining_model_forward.6} parent=0 // pred_check
    _
  $region19: #{pretraining_model_forward.6} parent=0 // pred_check_branch
    %21 = sbr.rel (0) target = $region21
  $region20: #{pretraining_model_forward.6} parent=0 // pred_region
    _
  $region21: #{pretraining_model_forward.6} parent=0 // pred_fallthru
    _
  // Predicated region
  $region22: #{pretraining_model_forward.6} parent=0 // pred_check
    _
  $region23: #{pretraining_model_forward.6} parent=0 // pred_check_branch
    %23 = sbr.rel (0) target = $region25
  $region24: #{pretraining_model_forward.6} parent=0 // pred_region
    _
  $region25: #{pretraining_model_forward.6} parent=0 // pred_fallthru
    _
  // Predicated region
  $region26: #{pretraining_model_forward.6} parent=0 // pred_check
    _
  $region27: #{pretraining_model_forward.6} parent=0 // pred_check_branch
    %25 = sbr.rel (0) target = $region29
  $region28: #{pretraining_model_forward.6} parent=0 // pred_region
    _
  $region29: #{pretraining_model_forward.6} parent=0 // pred_fallthru
    _
  %v27 = vld [vmem:[%s0] sm:$0xff]
  %v28 = vld [vmem:[%s0 + $0x8] sm:$0xff]
  %v29 = vpack.c.bf16 %v28, %v27
  %v30 = vld [vmem:[%s1] sm:$0xf]
  %v31 = vld [vmem:[%s1 + $0x4] sm:$0xf]
  %v32 = vld [vmem:[%s1 + $0x8] sm:$0xf]
  %v33 = vld [vmem:[%s1 + $0xc] sm:$0xf]
  %v34 = vld [vmem:[%s2] sm:$0x1]
  %v36 = vlaneseq
  %v37 = vshrl.u32 %v36, 7
  %v38 = vsub.s32 0, %v37
  %v39 = vrot.slane %v34, %v38
  %v45 = vunpack.c.l.b16 %v30
  %v46 = vunpack.c.l.b16 %v31
  %v47 = vunpack.c.l.b16 %v32
  %v48 = vunpack.c.l.b16 %v33
  %v49 = vpack.c.b16 %v46, %v45
  %v50 = vpack.c.b16 %v48, %v47
  %vm53 = vcmask 261120
  %v55 = vsel %vm53, %v29, 0
  %57 = vmatprep.subr.bf16.mxu0 0
  %58 = vmatpush1.bf16.msra.mxu0 0
  %59 = vmatprep.subr.bf16.mxu0 0
  %60 = vmatpush1.bf16.msra.mxu0 0
  %61 = vmatprep.subr.bf16.mxu0 0
  %62 = vmatpush1.bf16.msra.mxu0 0
  %63 = vmatprep.subr.bf16.mxu0 0
  %64 = vmatpush1.bf16.msra.mxu0 0
  %65 = vmatprep.subr.bf16.mxu0 0
  %66 = vmatpush1.bf16.msra.mxu0 0
  %67 = vmatprep.subr.bf16.mxu0 0
  %68 = vmatpush1.bf16.msra.mxu0 0
  %69 = vmatprep.subr.bf16.mxu0 0
  %70 = vmatpush1.bf16.msra.mxu0 %v50
  %71 = vmatprep.subr.bf16.mxu0 0
  %72 = vmatpush1.bf16.msra.mxu0 %v49
  %73 = vmatprep.subr.bf16.mxu0 0
  %74 = vmatpush2.bf16.msra.mxu0 0
  %75 = vmatprep.subr.bf16.mxu0 0
  %76 = vmatpush2.bf16.msra.mxu0 0
  %77 = vmatprep.subr.bf16.mxu0 0
  %78 = vmatpush2.bf16.msra.mxu0 0
  %79 = vmatprep.subr.bf16.mxu0 0
  %80 = vmatpush2.bf16.msra.mxu0 0
  %81 = vmatprep.subr.bf16.mxu0 0
  %82 = vmatpush2.bf16.msra.mxu0 0
  %83 = vmatprep.subr.bf16.mxu0 0
  %84 = vmatpush2.bf16.msra.mxu0 0
  %85 = vmatprep.subr.bf16.mxu0 0
  %86 = vmatpush2.bf16.msra.mxu0 0
  %87 = vmatprep.subr.bf16.mxu0 0
  %88 = vmatpush2.bf16.msra.mxu0 0
  %89 = vmatprep.mubr.bf16.mxu0 0
  %90 = vmatmul.mubr.bf16.gmra.mxu0 %v55
  %v91 = vpop.f32.mrf.mxu0
  %v92 = vadd.f32 %v39, %v91
  %v93 = vpop.f32.mrf.mxu0
  %v94 = vpop.f32.mrf.mxu0
  %v95 = vadd.f32 %v39, %v94
  %v96 = vpop.f32.mrf.mxu0
  %97 = vdwg.mxu0
  %v98 = vmax.f32 %v92, 0.0
  %v99 = vmax.f32 %v95, 0.0
  %v100 = vpack.c.bf16 %v99, %v98
  %v101 = vld [vmem:[%s3] sm:$0xf]
  %v102 = vld [vmem:[%s3 + $0x4] sm:$0xf]
  %v103 = vld [vmem:[%s3 + $0x8] sm:$0xf]
  %v104 = vld [vmem:[%s3 + $0xc] sm:$0xf]
  %v105 = vld [vmem:[%s3 + $0x10] sm:$0xf]
  %v106 = vld [vmem:[%s3 + $0x14] sm:$0xf]
  %v107 = vld [vmem:[%s3 + $0x18] sm:$0xf]
  %v108 = vld [vmem:[%s3 + $0x1c] sm:$0xf]
  %v109 = vld [vmem:[%s4] sm:$0x1]
  %v111 = vlaneseq
  %v112 = vshrl.u32 %v111, 7
  %v113 = vsub.s32 0, %v112
  %v114 = vrot.slane %v109, %v113
  %v124 = vunpack.c.l.b16 %v101
  %v125 = vunpack.c.l.b16 %v102
  %v126 = vunpack.c.l.b16 %v103
  %v127 = vunpack.c.l.b16 %v104
  %v128 = vunpack.c.l.b16 %v105
  %v129 = vunpack.c.l.b16 %v106
  %v130 = vunpack.c.l.b16 %v107
  %v131 = vunpack.c.l.b16 %v108
  %v132 = vpack.c.b16 %v125, %v124
  %v133 = vpack.c.b16 %v127, %v126
  %v134 = vpack.c.b16 %v129, %v128
  %v135 = vpack.c.b16 %v131, %v130
  %vm140 = vcmask 523264
  %v142 = vsel %vm140, %v100, 0
  %144 = vmatprep.subr.bf16.mxu0 0
  %145 = vmatpush1.bf16.msra.mxu0 0
  %146 = vmatprep.subr.bf16.mxu0 0
  %147 = vmatpush1.bf16.msra.mxu0 0
  %148 = vmatprep.subr.bf16.mxu0 0
  %149 = vmatpush1.bf16.msra.mxu0 0
  %150 = vmatprep.subr.bf16.mxu0 0
  %151 = vmatpush1.bf16.msra.mxu0 0
  %152 = vmatprep.subr.bf16.mxu0 0
  %153 = vmatpush1.bf16.msra.mxu0 %v135
  %154 = vmatprep.subr.bf16.mxu0 0
  %155 = vmatpush1.bf16.msra.mxu0 %v134
  %156 = vmatprep.subr.bf16.mxu0 0
  %157 = vmatpush1.bf16.msra.mxu0 %v133
  %158 = vmatprep.subr.bf16.mxu0 0
  %159 = vmatpush1.bf16.msra.mxu0 %v132
  %160 = vmatprep.subr.bf16.mxu0 0
  %161 = vmatpush2.bf16.msra.mxu0 0
  %162 = vmatprep.subr.bf16.mxu0 0
  %163 = vmatpush2.bf16.msra.mxu0 0
  %164 = vmatprep.subr.bf16.mxu0 0
  %165 = vmatpush2.bf16.msra.mxu0 0
  %166 = vmatprep.subr.bf16.mxu0 0
  %167 = vmatpush2.bf16.msra.mxu0 0
  %168 = vmatprep.subr.bf16.mxu0 0
  %169 = vmatpush2.bf16.msra.mxu0 0
  %170 = vmatprep.subr.bf16.mxu0 0
  %171 = vmatpush2.bf16.msra.mxu0 0
  %172 = vmatprep.subr.bf16.mxu0 0
  %173 = vmatpush2.bf16.msra.mxu0 0
  %174 = vmatprep.subr.bf16.mxu0 0
  %175 = vmatpush2.bf16.msra.mxu0 0
  %176 = vmatprep.mubr.bf16.mxu0 0
  %177 = vmatmul.mubr.bf16.gmra.mxu0 %v142
  %v178 = vpop.f32.mrf.mxu0
  %v179 = vadd.f32 %v114, %v178
  %v180 = vpop.f32.mrf.mxu0
  %v181 = vpop.f32.mrf.mxu0
  %v182 = vadd.f32 %v114, %v181
  %v183 = vpop.f32.mrf.mxu0
  %184 = vdwg.mxu0
  %v185 = vadd.f32 %v27, %v179
  %v186 = vadd.f32 %v28, %v182
  %v187 = vsel %vm53, %v185, 0.0
  %188 = vadd.xlane.f32.xlu0 %v187
  %v189 = vpop.xlane.xlu0 %188
  %v190 = vsel %vm53, %v186, 0.0
  %191 = vadd.xlane.f32.xlu0 %v190
  %v192 = vpop.xlane.xlu0 %191
  %v193 = vrcp.pop 32.0
  %v194 = vmul.f32 %v189, %v193
  %v195 = vmul.f32 %v192, %v193
  %v196 = vsub.f32 %v185, %v194
  %v197 = vsub.f32 %v186, %v195
  %v198 = vmul.f32 %v196, %v196
  %v199 = vmul.f32 %v197, %v197
  %v200 = vsel %vm53, %v198, 0.0
  %201 = vadd.xlane.f32.xlu0 %v200
  %v202 = vpop.xlane.xlu0 %201
  %v203 = vsel %vm53, %v199, 0.0
  %204 = vadd.xlane.f32.xlu0 %v203
  %v205 = vpop.xlane.xlu0 %204
  %v206 = vmul.f32 %v202, %v193
  %v207 = vmul.f32 %v205, %v193
  %v208 = vadd.f32 %v206, 1e-05
  %v209 = vadd.f32 %v207, 1e-05
  %v210 = vrsqrt.pop %v208
  %v211 = vrsqrt.pop %v209
  %v212 = vmul.f32 %v196, %v210
  %v213 = vmul.f32 %v197, %v211
  %v214 = vld [vmem:[%s5] sm:$0x1]
  %v216 = vlaneseq
  %v217 = vshrl.u32 %v216, 7
  %v218 = vsub.s32 0, %v217
  %v219 = vrot.slane %v214, %v218
  %v221 = vmul.f32 %v212, %v219
  %v222 = vmul.f32 %v213, %v219
  %v223 = vld [vmem:[%s6] sm:$0x1]
  %v225 = vlaneseq
  %v226 = vshrl.u32 %v225, 7
  %v227 = vsub.s32 0, %v226
  %v228 = vrot.slane %v223, %v227
  %v230 = vadd.f32 %v221, %v228
  %v231 = vadd.f32 %v222, %v228
  %232 = vst.msk [vmem:[%s7] sm:$0xff] %vm53, %v230
  %233 = vst.msk [vmem:[%s7 + $0x8] sm:$0xff] %vm53, %v231
  // Predicated region
  $region30: #{pretraining_model_forward.6} parent=0 // pred_check
    _
  $region31: #{pretraining_model_forward.6} parent=0 // pred_check_branch
    %235 = sbr.rel (0) target = $region33
  $region32: #{pretraining_model_forward.6} parent=0 // pred_region
    _
  $region33: #{pretraining_model_forward.6} parent=0 // pred_fallthru
    _
  // Predicated region
  $region34: #{pretraining_model_forward.6} parent=0 // pred_check
    _
  $region35: #{pretraining_model_forward.6} parent=0 // pred_check_branch
    %237 = sbr.rel (0) target = $region37
  $region36: #{pretraining_model_forward.6} parent=0 // pred_region
    _
  $region37: #{pretraining_model_forward.6} parent=0 // pred_fallthru
    _

// kernel: pretraining_model_forward.5
$region0: #{pretraining_model_forward.5}
  #allocation0 [shape = 'u32[]', space=smem, size = 0x4, offset = 0x4, fixed_abs, tag = 'smem constant byte address 0x4 - core index']
  #allocation1 [shape = 'u32[144,128]{1,0:T(1,128)}', space=vmem, size = 0x12000, scoped, tag = 'internal scratch']
  %s0 = inlined_call_operand.vmem [shape: f32[2,8,32], index: 0, kind: input, shape index: {}]
  %s1 = inlined_call_operand.vmem [shape: bf16[4,32,8], index: 1, kind: input, shape index: {}]
  %s2 = inlined_call_operand.vmem [shape: f32[4,1,8], index: 2, kind: input, shape index: {}]
  %s3 = inlined_call_operand.vmem [shape: bf16[4,32,8], index: 3, kind: input, shape index: {}]
  %s4 = inlined_call_operand.vmem [shape: f32[4,1,8], index: 4, kind: input, shape index: {}]
  %s5 = inlined_call_operand.vmem [shape: bf16[4,32,8], index: 5, kind: input, shape index: {}]
  %s6 = inlined_call_operand.vmem [shape: f32[4,1,8], index: 6, kind: input, shape index: {}]
  %s7 = inlined_call_operand.vmem [shape: bf16[4,8,32], index: 7, kind: input, shape index: {}]
  %s8 = inlined_call_operand.vmem [shape: f32[1,32], index: 8, kind: input, shape index: {}]
  %s9 = inlined_call_operand.vmem [shape: f32[1,32], index: 9, kind: input, shape index: {}]
  %s10 = inlined_call_operand.vmem [shape: f32[1,32], index: 10, kind: input, shape index: {}]
  %s11 = inlined_call_operand.vmem [shape: f32[2,8,32], index: 11, kind: output, shape index: {}]
  %s12 = sld [smem:[#allocation0]]
  $region77: #{pretraining_model_forward.5} parent=0
    _
  %s14 = ssub.s32 1, %s12
  %s15 = scalar_select 0, %s14, %s12
  loop: start=0, step=1, limit=4
  $region2: #{pretraining_model_forward.5} parent=0 // loop_pre_header
    _
  $region3: #{pretraining_model_forward.5} parent=0 // loop_header
    %s17 = sphi 0, %s21
    %p18 = scmp.ge.s32.totalorder %s17, 4
    %s27 = sphi 0, %s29
    %s30 = sphi 0, %s27
    %s31 = sphi 0, %s30
    %s47 = sphi 0, %s31
    %s51 = sphi 0, %s51
    %s53 = sphi 0, %s51
    %s54 = sphi 0, %s53
    %s68 = sphi 0, %s54
    %s72 = sphi 0, %s72
    %s74 = sphi 0, %s72
    %s75 = sphi 0, %s74
    %s89 = sphi 0, %s75
    %s93 = sphi 0, %s93
    %s95 = sphi 0, %s93
    %s96 = sphi 0, %s95
    %s110 = sphi 0, %s96
    %s114 = sphi 0, %s114
    %s116 = sphi 0, %s114
    %s117 = sphi 0, %s116
    %s131 = sphi 0, %s117
    %s135 = sphi 0, %s135
    %s137 = sphi 0, %s135
    %s138 = sphi 0, %s137
    %s152 = sphi 0, %s138
    %s156 = sphi 0, %s156
    %s158 = sphi 0, %s156
    %s159 = sphi 0, %s158
    %s173 = sphi 0, %s159
    %s177 = sphi 0, %s177
    %s179 = sphi 0, %s177
    %s180 = sphi 0, %s179
    %s194 = sphi 0, %s180
    %s198 = sphi 0, %s198
    %s200 = sphi 0, %s198
    %s201 = sphi 0, %s200
    %s215 = sphi 0, %s201
    %s219 = sphi 0, %s219
    %s221 = sphi 0, %s219
    %s222 = sphi 0, %s221
    %s236 = sphi 0, %s222
    %s240 = sphi 0, %s240
    %s242 = sphi 0, %s240
    %s243 = sphi 0, %s242
    %s257 = sphi 0, %s243
    %s263 = sphi 0, %s265
    %s266 = sphi 0, %s263
    %s267 = sphi 0, %s266
    %s283 = sphi 0, %s267
  $region4: #{pretraining_model_forward.5} parent=0 // loop_header_branch
    %20 = sbr.rel (%p18) target = $region8
  $region5: #{pretraining_model_forward.5} parent=0 // loop_body
    %s22 = ssub.s32 %s17, 1
    %s23 = ssub.s32 %s17, 2
    %s24 = sadd.s32 %s17, 1
    %s25 = ssub.s32 %s17, %s24
    %p26 = scmp.eq.s32.totalorder %s25, 0
    %s28 = sadd.s32 %s27, 1
    %s29 = scalar_select %p26, %s27, %s28
    %p32 = pneg %p26
    %p33 = scmp.eq.s32.totalorder %s17, 1
    %p34 = por %p32, %p33
    %p35 = scmp.ne.s32.totalorder %s27, %s30
    %p36 = scmp.eq.s32.totalorder %s17, 0
    %p37 = por %p35, %p36
    %p38 = scmp.ne.s32.totalorder %s27, %s30
    %p39 = scmp.eq.s32.totalorder %s22, 1
    %p40 = por %p38, %p39
    %p41 = scmp.ne.s32.totalorder %s30, %s31
    %p42 = scmp.eq.s32.totalorder %s22, 0
    %p43 = por %p41, %p42
    %p44 = scmp.ne.s32.totalorder %s30, %s31
    %p45 = scmp.eq.s32.totalorder %s23, 1
    %p46 = por %p44, %p45
    %p48 = scmp.ne.s32.totalorder %s31, %s47
    %p49 = scmp.eq.s32.totalorder %s23, 0
    %p50 = por %p48, %p49
    %s52 = sadd.s32 %s51, 1
    %p55 = scmp.eq.s32.totalorder %s17, 1
    %p56 = scmp.ne.s32.totalorder %s51, %s53
    %p57 = scmp.eq.s32.totalorder %s17, 0
    %p58 = por %p56, %p57
    %p59 = scmp.ne.s32.totalorder %s51, %s53
    %p60 = scmp.eq.s32.totalorder %s22, 1
    %p61 = por %p59, %p60
    %p62 = scmp.ne.s32.totalorder %s53, %s54
    %p63 = scmp.eq.s32.totalorder %s22, 0
    %p64 = por %p62, %p63
    %p65 = scmp.ne.s32.totalorder %s53, %s54
    %p66 = scmp.eq.s32.totalorder %s23, 1
    %p67 = por %p65, %p66
    %p69 = scmp.ne.s32.totalorder %s54, %s68
    %p70 = scmp.eq.s32.totalorder %s23, 0
    %p71 = por %p69, %p70
    %s73 = sadd.s32 %s72, 1
    %p76 = scmp.eq.s32.totalorder %s17, 1
    %p77 = scmp.ne.s32.totalorder %s72, %s74
    %p78 = scmp.eq.s32.totalorder %s17, 0
    %p79 = por %p77, %p78
    %p80 = scmp.ne.s32.totalorder %s72, %s74
    %p81 = scmp.eq.s32.totalorder %s22, 1
    %p82 = por %p80, %p81
    %p83 = scmp.ne.s32.totalorder %s74, %s75
    %p84 = scmp.eq.s32.totalorder %s22, 0
    %p85 = por %p83, %p84
    %p86 = scmp.ne.s32.totalorder %s74, %s75
    %p87 = scmp.eq.s32.totalorder %s23, 1
    %p88 = por %p86, %p87
    %p90 = scmp.ne.s32.totalorder %s75, %s89
    %p91 = scmp.eq.s32.totalorder %s23, 0
    %p92 = por %p90, %p91
    %s94 = sadd.s32 %s93, 1
    %p97 = scmp.eq.s32.totalorder %s17, 1
    %p98 = scmp.ne.s32.totalorder %s93, %s95
    %p99 = scmp.eq.s32.totalorder %s17, 0
    %p100 = por %p98, %p99
    %p101 = scmp.ne.s32.totalorder %s93, %s95
    %p102 = scmp.eq.s32.totalorder %s22, 1
    %p103 = por %p101, %p102
    %p104 = scmp.ne.s32.totalorder %s95, %s96
    %p105 = scmp.eq.s32.totalorder %s22, 0
    %p106 = por %p104, %p105
    %p107 = scmp.ne.s32.totalorder %s95, %s96
    %p108 = scmp.eq.s32.totalorder %s23, 1
    %p109 = por %p107, %p108
    %p111 = scmp.ne.s32.totalorder %s96, %s110
    %p112 = scmp.eq.s32.totalorder %s23, 0
    %p113 = por %p111, %p112
    %s115 = sadd.s32 %s114, 1
    %p118 = scmp.eq.s32.totalorder %s17, 1
    %p119 = scmp.ne.s32.totalorder %s114, %s116
    %p120 = scmp.eq.s32.totalorder %s17, 0
    %p121 = por %p119, %p120
    %p122 = scmp.ne.s32.totalorder %s114, %s116
    %p123 = scmp.eq.s32.totalorder %s22, 1
    %p124 = por %p122, %p123
    %p125 = scmp.ne.s32.totalorder %s116, %s117
    %p126 = scmp.eq.s32.totalorder %s22, 0
    %p127 = por %p125, %p126
    %p128 = scmp.ne.s32.totalorder %s116, %s117
    %p129 = scmp.eq.s32.totalorder %s23, 1
    %p130 = por %p128, %p129
    %p132 = scmp.ne.s32.totalorder %s117, %s131
    %p133 = scmp.eq.s32.totalorder %s23, 0
    %p134 = por %p132, %p133
    %s136 = sadd.s32 %s135, 1
    %p139 = scmp.eq.s32.totalorder %s17, 1
    %p140 = scmp.ne.s32.totalorder %s135, %s137
    %p141 = scmp.eq.s32.totalorder %s17, 0
    %p142 = por %p140, %p141
    %p143 = scmp.ne.s32.totalorder %s135, %s137
    %p144 = scmp.eq.s32.totalorder %s22, 1
    %p145 = por %p143, %p144
    %p146 = scmp.ne.s32.totalorder %s137, %s138
    %p147 = scmp.eq.s32.totalorder %s22, 0
    %p148 = por %p146, %p147
    %p149 = scmp.ne.s32.totalorder %s137, %s138
    %p150 = scmp.eq.s32.totalorder %s23, 1
    %p151 = por %p149, %p150
    %p153 = scmp.ne.s32.totalorder %s138, %s152
    %p154 = scmp.eq.s32.totalorder %s23, 0
    %p155 = por %p153, %p154
    %s157 = sadd.s32 %s156, 1
    %p160 = scmp.eq.s32.totalorder %s17, 1
    %p161 = scmp.ne.s32.totalorder %s156, %s158
    %p162 = scmp.eq.s32.totalorder %s17, 0
    %p163 = por %p161, %p162
    %p164 = scmp.ne.s32.totalorder %s156, %s158
    %p165 = scmp.eq.s32.totalorder %s22, 1
    %p166 = por %p164, %p165
    %p167 = scmp.ne.s32.totalorder %s158, %s159
    %p168 = scmp.eq.s32.totalorder %s22, 0
    %p169 = por %p167, %p168
    %p170 = scmp.ne.s32.totalorder %s158, %s159
    %p171 = scmp.eq.s32.totalorder %s23, 1
    %p172 = por %p170, %p171
    %p174 = scmp.ne.s32.totalorder %s159, %s173
    %p175 = scmp.eq.s32.totalorder %s23, 0
    %p176 = por %p174, %p175
    %s178 = sadd.s32 %s177, 1
    %p181 = scmp.eq.s32.totalorder %s17, 1
    %p182 = scmp.ne.s32.totalorder %s177, %s179
    %p183 = scmp.eq.s32.totalorder %s17, 0
    %p184 = por %p182, %p183
    %p185 = scmp.ne.s32.totalorder %s177, %s179
    %p186 = scmp.eq.s32.totalorder %s22, 1
    %p187 = por %p185, %p186
    %p188 = scmp.ne.s32.totalorder %s179, %s180
    %p189 = scmp.eq.s32.totalorder %s22, 0
    %p190 = por %p188, %p189
    %p191 = scmp.ne.s32.totalorder %s179, %s180
    %p192 = scmp.eq.s32.totalorder %s23, 1
    %p193 = por %p191, %p192
    %p195 = scmp.ne.s32.totalorder %s180, %s194
    %p196 = scmp.eq.s32.totalorder %s23, 0
    %p197 = por %p195, %p196
    %s199 = sadd.s32 %s198, 1
    %p202 = scmp.eq.s32.totalorder %s17, 1
    %p203 = scmp.ne.s32.totalorder %s198, %s200
    %p204 = scmp.eq.s32.totalorder %s17, 0
    %p205 = por %p203, %p204
    %p206 = scmp.ne.s32.totalorder %s198, %s200
    %p207 = scmp.eq.s32.totalorder %s22, 1
    %p208 = por %p206, %p207
    %p209 = scmp.ne.s32.totalorder %s200, %s201
    %p210 = scmp.eq.s32.totalorder %s22, 0
    %p211 = por %p209, %p210
    %p212 = scmp.ne.s32.totalorder %s200, %s201
    %p213 = scmp.eq.s32.totalorder %s23, 1
    %p214 = por %p212, %p213
    %p216 = scmp.ne.s32.totalorder %s201, %s215
    %p217 = scmp.eq.s32.totalorder %s23, 0
    %p218 = por %p216, %p217
    %s220 = sadd.s32 %s219, 1
    %p223 = scmp.eq.s32.totalorder %s17, 1
    %p224 = scmp.ne.s32.totalorder %s219, %s221
    %p225 = scmp.eq.s32.totalorder %s17, 0
    %p226 = por %p224, %p225
    %p227 = scmp.ne.s32.totalorder %s219, %s221
    %p228 = scmp.eq.s32.totalorder %s22, 1
    %p229 = por %p227, %p228
    %p230 = scmp.ne.s32.totalorder %s221, %s222
    %p231 = scmp.eq.s32.totalorder %s22, 0
    %p232 = por %p230, %p231
    %p233 = scmp.ne.s32.totalorder %s221, %s222
    %p234 = scmp.eq.s32.totalorder %s23, 1
    %p235 = por %p233, %p234
    %p237 = scmp.ne.s32.totalorder %s222, %s236
    %p238 = scmp.eq.s32.totalorder %s23, 0
    %p239 = por %p237, %p238
    %s241 = sadd.s32 %s240, 1
    %p244 = scmp.eq.s32.totalorder %s17, 1
    %p245 = scmp.ne.s32.totalorder %s240, %s242
    %p246 = scmp.eq.s32.totalorder %s17, 0
    %p247 = por %p245, %p246
    %p248 = scmp.ne.s32.totalorder %s240, %s242
    %p249 = scmp.eq.s32.totalorder %s22, 1
    %p250 = por %p248, %p249
    %p251 = scmp.ne.s32.totalorder %s242, %s243
    %p252 = scmp.eq.s32.totalorder %s22, 0
    %p253 = por %p251, %p252
    %p254 = scmp.ne.s32.totalorder %s242, %s243
    %p255 = scmp.eq.s32.totalorder %s23, 1
    %p256 = por %p254, %p255
    %p258 = scmp.ne.s32.totalorder %s243, %s257
    %p259 = scmp.eq.s32.totalorder %s23, 0
    %p260 = por %p258, %p259
    %s261 = ssub.s32 %s17, %s24
    %p262 = scmp.eq.s32.totalorder %s261, 0
    %s264 = sadd.s32 %s263, 1
    %s265 = scalar_select %p262, %s263, %s264
    %p268 = pneg %p262
    %p269 = scmp.eq.s32.totalorder %s17, 1
    %p270 = por %p268, %p269
    %p271 = scmp.ne.s32.totalorder %s263, %s266
    %p272 = scmp.eq.s32.totalorder %s17, 0
    %p273 = por %p271, %p272
    %p274 = scmp.ne.s32.totalorder %s263, %s266
    %p275 = scmp.eq.s32.totalorder %s22, 1
    %p276 = por %p274, %p275
    %p277 = scmp.ne.s32.totalorder %s266, %s267
    %p278 = scmp.eq.s32.totalorder %s22, 0
    %p279 = por %p277, %p278
    %p280 = scmp.ne.s32.totalorder %s266, %s267
    %p281 = scmp.eq.s32.totalorder %s23, 1
    %p282 = por %p280, %p281
    %p284 = scmp.ne.s32.totalorder %s267, %s283
    %p285 = scmp.eq.s32.totalorder %s23, 0
    %p286 = por %p284, %p285
    %p287 = scmp.le.s32.totalorder 1, %s17
    %p288 = scmp.lt.s32.totalorder %s17, 3
    %p289 = pnand %p287, %p288
    %p290 = pneg %p289
    // Predicated region
    $region9: #{pretraining_model_forward.5} parent=5 // pred_check
      _
    $region10: #{pretraining_model_forward.5} parent=5 // pred_check_branch
      %292 = sbr.rel (%p289) target = $region12
    $region11: #{pretraining_model_forward.5} parent=5 // pred_region
      %s293 = ssub.s32 %s17, 1
      // Predicated region
      $region13: #{pretraining_model_forward.5} parent=11 // pred_check
        %p294 = pneg %p64
      $region14: #{pretraining_model_forward.5} parent=11 // pred_check_branch
        %296 = sbr.rel (%p294) target = $region16
      $region15: #{pretraining_model_forward.5} parent=11 // pred_region
        _
      $region16: #{pretraining_model_forward.5} parent=11 // pred_fallthru
        _
      // Predicated region
      $region17: #{pretraining_model_forward.5} parent=11 // pred_check
        %p297 = pneg %p85
      $region18: #{pretraining_model_forward.5} parent=11 // pred_check_branch
        %299 = sbr.rel (%p297) target = $region20
      $region19: #{pretraining_model_forward.5} parent=11 // pred_region
        _
      $region20: #{pretraining_model_forward.5} parent=11 // pred_fallthru
        _
      // Predicated region
      $region21: #{pretraining_model_forward.5} parent=11 // pred_check
        %p300 = pneg %p106
      $region22: #{pretraining_model_forward.5} parent=11 // pred_check_branch
        %302 = sbr.rel (%p300) target = $region24
      $region23: #{pretraining_model_forward.5} parent=11 // pred_region
        _
      $region24: #{pretraining_model_forward.5} parent=11 // pred_fallthru
        _
      // Predicated region
      $region25: #{pretraining_model_forward.5} parent=11 // pred_check
        %p303 = pneg %p127
      $region26: #{pretraining_model_forward.5} parent=11 // pred_check_branch
        %305 = sbr.rel (%p303) target = $region28
      $region27: #{pretraining_model_forward.5} parent=11 // pred_region
        _
      $region28: #{pretraining_model_forward.5} parent=11 // pred_fallthru
        _
      // Predicated region
      $region29: #{pretraining_model_forward.5} parent=11 // pred_check
        %p306 = pneg %p148
      $region30: #{pretraining_model_forward.5} parent=11 // pred_check_branch
        %308 = sbr.rel (%p306) target = $region32
      $region31: #{pretraining_model_forward.5} parent=11 // pred_region
        _
      $region32: #{pretraining_model_forward.5} parent=11 // pred_fallthru
        _
      // Predicated region
      $region33: #{pretraining_model_forward.5} parent=11 // pred_check
        %p309 = pneg %p169
      $region34: #{pretraining_model_forward.5} parent=11 // pred_check_branch
        %311 = sbr.rel (%p309) target = $region36
      $region35: #{pretraining_model_forward.5} parent=11 // pred_region
        _
      $region36: #{pretraining_model_forward.5} parent=11 // pred_fallthru
        _
      // Predicated region
      $region37: #{pretraining_model_forward.5} parent=11 // pred_check
        %p312 = pneg %p190
      $region38: #{pretraining_model_forward.5} parent=11 // pred_check_branch
        %314 = sbr.rel (%p312) target = $region40
      $region39: #{pretraining_model_forward.5} parent=11 // pred_region
        _
      $region40: #{pretraining_model_forward.5} parent=11 // pred_fallthru
        _
      // Predicated region
      $region41: #{pretraining_model_forward.5} parent=11 // pred_check
        %p315 = pneg %p211
      $region42: #{pretraining_model_forward.5} parent=11 // pred_check_branch
        %317 = sbr.rel (%p315) target = $region44
      $region43: #{pretraining_model_forward.5} parent=11 // pred_region
        _
      $region44: #{pretraining_model_forward.5} parent=11 // pred_fallthru
        _
      // Predicated region
      $region45: #{pretraining_model_forward.5} parent=11 // pred_check
        %p318 = pneg %p232
      $region46: #{pretraining_model_forward.5} parent=11 // pred_check_branch
        %320 = sbr.rel (%p318) target = $region48
      $region47: #{pretraining_model_forward.5} parent=11 // pred_region
        _
      $region48: #{pretraining_model_forward.5} parent=11 // pred_fallthru
        _
      // Predicated region
      $region49: #{pretraining_model_forward.5} parent=11 // pred_check
        %p321 = pneg %p253
      $region50: #{pretraining_model_forward.5} parent=11 // pred_check_branch
        %323 = sbr.rel (%p321) target = $region52
      $region51: #{pretraining_model_forward.5} parent=11 // pred_region
        _
      $region52: #{pretraining_model_forward.5} parent=11 // pred_fallthru
        _
    $region12: #{pretraining_model_forward.5} parent=5 // pred_fallthru
      _
    %p324 = scmp.lt.s32.totalorder %s17, 2
    // Predicated region
    $region53: #{pretraining_model_forward.5} parent=5 // pred_check
      %p325 = pneg %p324
    $region54: #{pretraining_model_forward.5} parent=5 // pred_check_branch
      %327 = sbr.rel (%p325) target = $region56
    $region55: #{pretraining_model_forward.5} parent=5 // pred_region
      // Predicated region
      $region57: #{pretraining_model_forward.5} parent=55 // pred_check
        %p328 = pneg %p37
      $region58: #{pretraining_model_forward.5} parent=55 // pred_check_branch
        %330 = sbr.rel (%p328) target = $region60
      $region59: #{pretraining_model_forward.5} parent=55 // pred_region
        %p331 = scmp.lt.s32.totalorder %s17, 1
        %s332 = scalar_select %p331, %s17, 1
        %s333 = smul.addr %s332, 8
        %s334 = scalar_lea.vmem %s0, %s333
      $region60: #{pretraining_model_forward.5} parent=55 // pred_fallthru
        _
    $region56: #{pretraining_model_forward.5} parent=5 // pred_fallthru
      _
    %p335 = scmp.le.s32.totalorder 1, %s17
    %p336 = scmp.lt.s32.totalorder %s17, 3
    %p337 = pnand %p335, %p336
    %p338 = pneg %p337
    // Predicated region
    $region61: #{pretraining_model_forward.5} parent=5 // pred_check
      _
    $region62: #{pretraining_model_forward.5} parent=5 // pred_check_branch
      %340 = sbr.rel (%p337) target = $region64
    $region63: #{pretraining_model_forward.5} parent=5 // pred_region
      %s341 = ssub.s32 %s17, 1
      %p342 = scmp.lt.s32.totalorder %s22, 1
      %s343 = scalar_select %p342, %s22, 1
      %s344 = smul.addr %s343, 8
      %s345 = scalar_lea.vmem %s0, %s344
      %p346 = pneg %p43
      %p347 = pneg %p40
      %p348 = pneg %p64
      %p349 = pneg %p61
      %p350 = pneg %p85
      %p351 = pneg %p82
      %p352 = pneg %p106
      %p353 = pneg %p103
      %p354 = pneg %p127
      %p355 = pneg %p124
      %p356 = pneg %p148
      %p357 = pneg %p145
      %p358 = pneg %p169
      %p359 = pneg %p166
      %p360 = pneg %p190
      %p361 = pneg %p187
      %p362 = pneg %p211
      %p363 = pneg %p208
      %p364 = pneg %p232
      %p365 = pneg %p229
      %p366 = pneg %p253
      %p367 = pneg %p250
      %p368 = pneg %p279
      %p369 = pneg %p276
      %p370 = scmp.lt.s32.totalorder %s22, 1
      %s371 = scalar_select %p370, %s22, 1
      %s372 = smul.addr %s371, 8
      %s373 = scalar_lea.vmem %s11, %s372
      %p374 = scmp.lt.s32.totalorder %s22, 1
      %s375 = scalar_select %p374, %s22, 1
      %s376 = smul.addr %s375, 8
      %s377 = scalar_lea.vmem %s0, %s376
      %p378 = scmp.lt.s32.totalorder %s22, 1
      %s379 = scalar_select %p378, %s22, 1
      %s380 = smul.addr %s379, 8
      %s381 = scalar_lea.vmem %s11, %s380
      %v383 = vld [vmem:[%s377] sm:$0xff]
      %v384 = vpack.c.bf16 %v383, %v383
      %v385 = vld [vmem:[%s1] sm:$0xf]
      %v386 = vld [vmem:[%s1 + $0x4] sm:$0xf]
      %v387 = vld [vmem:[%s1 + $0x8] sm:$0xf]
      %v388 = vld [vmem:[%s1 + $0xc] sm:$0xf]
      %v389 = vld [vmem:[%s2] sm:$0x1]
      %v391 = vlaneseq
      %v392 = vshrl.u32 %v391, 7
      %v393 = vsub.s32 0, %v392
      %v394 = vrot.slane %v389, %v393
      %v400 = vunpack.c.l.b16 %v385
      %v401 = vunpack.c.l.b16 %v386
      %v402 = vunpack.c.l.b16 %v387
      %v403 = vunpack.c.l.b16 %v388
      %v404 = vpack.c.b16 %v401, %v400
      %v405 = vpack.c.b16 %v403, %v402
      %vm408 = vcmask 261120
      %v410 = vsel %vm408, %v384, 0
      %412 = vmatprep.subr.bf16.mxu0 0
      %413 = vmatpush1.bf16.msra.mxu0 0
      %414 = vmatprep.subr.bf16.mxu0 0
      %415 = vmatpush1.bf16.msra.mxu0 0
      %416 = vmatprep.subr.bf16.mxu0 0
      %417 = vmatpush1.bf16.msra.mxu0 0
      %418 = vmatprep.subr.bf16.mxu0 0
      %419 = vmatpush1.bf16.msra.mxu0 0
      %420 = vmatprep.subr.bf16.mxu0 0
      %421 = vmatpush1.bf16.msra.mxu0 0
      %422 = vmatprep.subr.bf16.mxu0 0
      %423 = vmatpush1.bf16.msra.mxu0 0
      %424 = vmatprep.subr.bf16.mxu0 0
      %425 = vmatpush1.bf16.msra.mxu0 %v405
      %426 = vmatprep.subr.bf16.mxu0 0
      %427 = vmatpush1.bf16.msra.mxu0 %v404
      %428 = vmatprep.subr.bf16.mxu0 0
      %429 = vmatpush2.bf16.msra.mxu0 0
      %430 = vmatprep.subr.bf16.mxu0 0
      %431 = vmatpush2.bf16.msra.mxu0 0
      %432 = vmatprep.subr.bf16.mxu0 0
      %433 = vmatpush2.bf16.msra.mxu0 0
      %434 = vmatprep.subr.bf16.mxu0 0
      %435 = vmatpush2.bf16.msra.mxu0 0
      %436 = vmatprep.subr.bf16.mxu0 0
      %437 = vmatpush2.bf16.msra.mxu0 0
      %438 = vmatprep.subr.bf16.mxu0 0
      %439 = vmatpush2.bf16.msra.mxu0 0
      %440 = vmatprep.subr.bf16.mxu0 0
      %441 = vmatpush2.bf16.msra.mxu0 0
      %442 = vmatprep.subr.bf16.mxu0 0
      %443 = vmatpush2.bf16.msra.mxu0 0
      %444 = vmatprep.mubr.bf16.mxu0 0
      %445 = vmatmul.mubr.bf16.gmra.mxu0 %v410
      %v446 = vpop.f32.mrf.mxu0
      %v447 = vadd.f32 %v394, %v446
      %v448 = vpop.f32.mrf.mxu0
      %v449 = vpop.f32.mrf.mxu0
      %v450 = vpop.f32.mrf.mxu0
      %451 = vdwg.mxu0
      %v452 = vld [vmem:[%s3] sm:$0xf]
      %v453 = vld [vmem:[%s3 + $0x4] sm:$0xf]
      %v454 = vld [vmem:[%s3 + $0x8] sm:$0xf]
      %v455 = vld [vmem:[%s3 + $0xc] sm:$0xf]
      %v456 = vld [vmem:[%s4] sm:$0x1]
      %v458 = vlaneseq
      %v459 = vshrl.u32 %v458, 7
      %v460 = vsub.s32 0, %v459
      %v461 = vrot.slane %v456, %v460
      %v467 = vunpack.c.l.b16 %v452
      %v468 = vunpack.c.l.b16 %v453
      %v469 = vunpack.c.l.b16 %v454
      %v470 = vunpack.c.l.b16 %v455
      %v471 = vpack.c.b16 %v468, %v467
      %v472 = vpack.c.b16 %v470, %v469
      %475 = vmatprep.subr.bf16.mxu0 0
      %476 = vmatpush1.bf16.msra.mxu0 0
      %477 = vmatprep.subr.bf16.mxu0 0
      %478 = vmatpush1.bf16.msra.mxu0 0
      %479 = vmatprep.subr.bf16.mxu0 0
      %480 = vmatpush1.bf16.msra.mxu0 0
      %481 = vmatprep.subr.bf16.mxu0 0
      %482 = vmatpush1.bf16.msra.mxu0 0
      %483 = vmatprep.subr.bf16.mxu0 0
      %484 = vmatpush1.bf16.msra.mxu0 0
      %485 = vmatprep.subr.bf16.mxu0 0
      %486 = vmatpush1.bf16.msra.mxu0 0
      %487 = vmatprep.subr.bf16.mxu0 0
      %488 = vmatpush1.bf16.msra.mxu0 %v472
      %489 = vmatprep.subr.bf16.mxu0 0
      %490 = vmatpush1.bf16.msra.mxu0 %v471
      %491 = vmatprep.subr.bf16.mxu0 0
      %492 = vmatpush2.bf16.msra.mxu0 0
      %493 = vmatprep.subr.bf16.mxu0 0
      %494 = vmatpush2.bf16.msra.mxu0 0
      %495 = vmatprep.subr.bf16.mxu0 0
      %496 = vmatpush2.bf16.msra.mxu0 0
      %497 = vmatprep.subr.bf16.mxu0 0
      %498 = vmatpush2.bf16.msra.mxu0 0
      %499 = vmatprep.subr.bf16.mxu0 0
      %500 = vmatpush2.bf16.msra.mxu0 0
      %501 = vmatprep.subr.bf16.mxu0 0
      %502 = vmatpush2.bf16.msra.mxu0 0
      %503 = vmatprep.subr.bf16.mxu0 0
      %504 = vmatpush2.bf16.msra.mxu0 0
      %505 = vmatprep.subr.bf16.mxu0 0
      %506 = vmatpush2.bf16.msra.mxu0 0
      %507 = vmatprep.mubr.bf16.mxu0 0
      %508 = vmatmul.mubr.bf16.gmra.mxu0 %v410
      %v509 = vpop.f32.mrf.mxu0
      %v510 = vadd.f32 %v461, %v509
      %v511 = vpop.f32.mrf.mxu0
      %v512 = vpop.f32.mrf.mxu0
      %v513 = vpop.f32.mrf.mxu0
      %514 = vdwg.mxu0
      %v515 = vld [vmem:[%s5] sm:$0xf]
      %v516 = vld [vmem:[%s5 + $0x4] sm:$0xf]
      %v517 = vld [vmem:[%s5 + $0x8] sm:$0xf]
      %v518 = vld [vmem:[%s5 + $0xc] sm:$0xf]
      %v519 = vld [vmem:[%s6] sm:$0x1]
      %v521 = vlaneseq
      %v522 = vshrl.u32 %v521, 7
      %v523 = vsub.s32 0, %v522
      %v524 = vrot.slane %v519, %v523
      %v530 = vunpack.c.l.b16 %v515
      %v531 = vunpack.c.l.b16 %v516
      %v532 = vunpack.c.l.b16 %v517
      %v533 = vunpack.c.l.b16 %v518
      %v534 = vpack.c.b16 %v531, %v530
      %v535 = vpack.c.b16 %v533, %v532
      %538 = vmatprep.subr.bf16.mxu0 0
      %539 = vmatpush1.bf16.msra.mxu0 0
      %540 = vmatprep.subr.bf16.mxu0 0
      %541 = vmatpush1.bf16.msra.mxu0 0
      %542 = vmatprep.subr.bf16.mxu0 0
      %543 = vmatpush1.bf16.msra.mxu0 0
      %544 = vmatprep.subr.bf16.mxu0 0
      %545 = vmatpush1.bf16.msra.mxu0 0
      %546 = vmatprep.subr.bf16.mxu0 0
      %547 = vmatpush1.bf16.msra.mxu0 0
      %548 = vmatprep.subr.bf16.mxu0 0
      %549 = vmatpush1.bf16.msra.mxu0 0
      %550 = vmatprep.subr.bf16.mxu0 0
      %551 = vmatpush1.bf16.msra.mxu0 %v535
      %552 = vmatprep.subr.bf16.mxu0 0
      %553 = vmatpush1.bf16.msra.mxu0 %v534
      %554 = vmatprep.subr.bf16.mxu0 0
      %555 = vmatpush2.bf16.msra.mxu0 0
      %556 = vmatprep.subr.bf16.mxu0 0
      %557 = vmatpush2.bf16.msra.mxu0 0
      %558 = vmatprep.subr.bf16.mxu0 0
      %559 = vmatpush2.bf16.msra.mxu0 0
      %560 = vmatprep.subr.bf16.mxu0 0
      %561 = vmatpush2.bf16.msra.mxu0 0
      %562 = vmatprep.subr.bf16.mxu0 0
      %563 = vmatpush2.bf16.msra.mxu0 0
      %564 = vmatprep.subr.bf16.mxu0 0
      %565 = vmatpush2.bf16.msra.mxu0 0
      %566 = vmatprep.subr.bf16.mxu0 0
      %567 = vmatpush2.bf16.msra.mxu0 0
      %568 = vmatprep.subr.bf16.mxu0 0
      %569 = vmatpush2.bf16.msra.mxu0 0
      %570 = vmatprep.mubr.bf16.mxu0 0
      %571 = vmatmul.mubr.bf16.gmra.mxu0 %v410
      %v572 = vpop.f32.mrf.mxu0
      %v573 = vadd.f32 %v524, %v572
      %v574 = vpop.f32.mrf.mxu0
      %v575 = vpop.f32.mrf.mxu0
      %v576 = vpop.f32.mrf.mxu0
      %577 = vdwg.mxu0
      %v578 = vmul.f32 %v447, 0.35355338
      %v579 = vpack.c.bf16 %v578, %v578
      %v580 = vpack.c.bf16 %v510, %v510
      %vm581 = vcmask 64512
      %v583 = vsel %vm581, %v579, 0
      %v586 = vsel %vm581, %v580, 0
      %588 = vmatprep.subr.bf16.mxu0 0
      %589 = vmatpush1.bf16.xpose.msra.mxu0 0
      %590 = vmatprep.subr.bf16.mxu0 0
      %591 = vmatpush1.bf16.xpose.msra.mxu0 0
      %592 = vmatprep.subr.bf16.mxu0 0
      %593 = vmatpush1.bf16.xpose.msra.mxu0 0
      %594 = vmatprep.subr.bf16.mxu0 0
      %595 = vmatpush1.bf16.xpose.msra.mxu0 0
      %596 = vmatprep.subr.bf16.mxu0 0
      %597 = vmatpush1.bf16.xpose.msra.mxu0 0
      %598 = vmatprep.subr.bf16.mxu0 0
      %599 = vmatpush1.bf16.xpose.msra.mxu0 0
      %600 = vmatprep.subr.bf16.mxu0 0
      %601 = vmatpush1.bf16.xpose.msra.mxu0 0
      %602 = vmatprep.subr.bf16.mxu0 0
      %603 = vmatpush1.bf16.xpose.msra.mxu0 %v586
      %604 = vmatprep.subr.bf16.mxu0 0
      %605 = vmatpush2.bf16.xpose.msra.mxu0 0
      %606 = vmatprep.subr.bf16.mxu0 0
      %607 = vmatpush2.bf16.xpose.msra.mxu0 0
      %608 = vmatprep.subr.bf16.mxu0 0
      %609 = vmatpush2.bf16.xpose.msra.mxu0 0
      %610 = vmatprep.subr.bf16.mxu0 0
      %611 = vmatpush2.bf16.xpose.msra.mxu0 0
      %612 = vmatprep.subr.bf16.mxu0 0
      %613 = vmatpush2.bf16.xpose.msra.mxu0 0
      %614 = vmatprep.subr.bf16.mxu0 0
      %615 = vmatpush2.bf16.xpose.msra.mxu0 0
      %616 = vmatprep.subr.bf16.mxu0 0
      %617 = vmatpush2.bf16.xpose.msra.mxu0 0
      %618 = vmatprep.subr.bf16.mxu0 0
      %619 = vmatpush2.bf16.xpose.msra.mxu0 0
      %620 = vmatprep.mubr.bf16.mxu0 0
      %621 = vmatmul.mubr.bf16.gmra.mxu0 %v583
      %v622 = vpop.f32.mrf.mxu0
      %v623 = vadd.f32 0.0, %v622
      %v624 = vpop.f32.mrf.mxu0
      %v625 = vpop.f32.mrf.mxu0
      %v626 = vpop.f32.mrf.mxu0
      %627 = vdwg.mxu0
      %v628 = vsel %vm581, %v623, -inf
      %629 = vmax.xlane.f32.xlu0 %v628
      %v630 = vpop.xlane.xlu0 %629
      %v631 = vsub.f32 %v623, %v630
      %v632 = vmul.f32 %v631, 1.442695
      %v633 = vpow.pop %v632
      %v634 = vsel %vm581, %v633, 0.0
      %635 = vadd.xlane.f32.xlu0 %v634
      %v636 = vpop.xlane.xlu0 %635
      %v637 = vrcp.pop %v636
      %v638 = vmul.f32 %v633, %v637
      %v639 = vpack.c.bf16 %v638, %v638
      %v640 = vpack.c.bf16 %v573, %v573
      %v642 = vsel %vm581, %v639, 0
      %vm644 = vcmask 1043456
      %v646 = vsel %vm644, %v640, 0
      %648 = vmatprep.subr.bf16.mxu0 0
      %649 = vmatpush1.bf16.msra.mxu0 0
      %650 = vmatprep.subr.bf16.mxu0 0
      %651 = vmatpush1.bf16.msra.mxu0 0
      %652 = vmatprep.subr.bf16.mxu0 0
      %653 = vmatpush1.bf16.msra.mxu0 0
      %654 = vmatprep.subr.bf16.mxu0 0
      %655 = vmatpush1.bf16.msra.mxu0 0
      %656 = vmatprep.subr.bf16.mxu0 0
      %657 = vmatpush1.bf16.msra.mxu0 0
      %658 = vmatprep.subr.bf16.mxu0 0
      %659 = vmatpush1.bf16.msra.mxu0 0
      %660 = vmatprep.subr.bf16.mxu0 0
      %661 = vmatpush1.bf16.msra.mxu0 0
      %662 = vmatprep.subr.bf16.mxu0 0
      %663 = vmatpush1.bf16.msra.mxu0 %v646
      %664 = vmatprep.subr.bf16.mxu0 0
      %665 = vmatpush2.bf16.msra.mxu0 0
      %666 = vmatprep.subr.bf16.mxu0 0
      %667 = vmatpush2.bf16.msra.mxu0 0
      %668 = vmatprep.subr.bf16.mxu0 0
      %669 = vmatpush2.bf16.msra.mxu0 0
      %670 = vmatprep.subr.bf16.mxu0 0
      %671 = vmatpush2.bf16.msra.mxu0 0
      %672 = vmatprep.subr.bf16.mxu0 0
      %673 = vmatpush2.bf16.msra.mxu0 0
      %674 = vmatprep.subr.bf16.mxu0 0
      %675 = vmatpush2.bf16.msra.mxu0 0
      %676 = vmatprep.subr.bf16.mxu0 0
      %677 = vmatpush2.bf16.msra.mxu0 0
      %678 = vmatprep.subr.bf16.mxu0 0
      %679 = vmatpush2.bf16.msra.mxu0 0
      %680 = vmatprep.mubr.bf16.mxu0 0
      %681 = vmatmul.mubr.bf16.gmra.mxu0 %v642
      %v682 = vpop.f32.mrf.mxu0
      %v683 = vadd.f32 0.0, %v682
      %v684 = vpop.f32.mrf.mxu0
      %v685 = vpop.f32.mrf.mxu0
      %v686 = vpop.f32.mrf.mxu0
      %687 = vdwg.mxu0
      %v688 = vpack.c.bf16 %v683, %v683
      %v689 = vld [vmem:[%s7] sm:$0xf]
      %s690 = scalar_lea.vmem %s1, 16
      %v691 = vld [vmem:[%s690] sm:$0xf]
      %v692 = vld [vmem:[%s690 + $0x4] sm:$0xf]
      %v693 = vld [vmem:[%s690 + $0x8] sm:$0xf]
      %v694 = vld [vmem:[%s690 + $0xc] sm:$0xf]
      %s695 = scalar_lea.vmem %s2, 1
      %v696 = vld [vmem:[%s695] sm:$0x1]
      %v698 = vlaneseq
      %v699 = vshrl.u32 %v698, 7
      %v700 = vsub.s32 0, %v699
      %v701 = vrot.slane %v696, %v700
      %v707 = vunpack.c.l.b16 %v691
      %v708 = vunpack.c.l.b16 %v692
      %v709 = vunpack.c.l.b16 %v693
      %v710 = vunpack.c.l.b16 %v694
      %v711 = vpack.c.b16 %v708, %v707
      %v712 = vpack.c.b16 %v710, %v709
      %715 = vmatprep.subr.bf16.mxu0 0
      %716 = vmatpush1.bf16.msra.mxu0 0
      %717 = vmatprep.subr.bf16.mxu0 0
      %718 = vmatpush1.bf16.msra.mxu0 0
      %719 = vmatprep.subr.bf16.mxu0 0
      %720 = vmatpush1.bf16.msra.mxu0 0
      %721 = vmatprep.subr.bf16.mxu0 0
      %722 = vmatpush1.bf16.msra.mxu0 0
      %723 = vmatprep.subr.bf16.mxu0 0
      %724 = vmatpush1.bf16.msra.mxu0 0
      %725 = vmatprep.subr.bf16.mxu0 0
      %726 = vmatpush1.bf16.msra.mxu0 0
      %727 = vmatprep.subr.bf16.mxu0 0
      %728 = vmatpush1.bf16.msra.mxu0 %v712
      %729 = vmatprep.subr.bf16.mxu0 0
      %730 = vmatpush1.bf16.msra.mxu0 %v711
      %731 = vmatprep.subr.bf16.mxu0 0
      %732 = vmatpush2.bf16.msra.mxu0 0
      %733 = vmatprep.subr.bf16.mxu0 0
      %734 = vmatpush2.bf16.msra.mxu0 0
      %735 = vmatprep.subr.bf16.mxu0 0
      %736 = vmatpush2.bf16.msra.mxu0 0
      %737 = vmatprep.subr.bf16.mxu0 0
      %738 = vmatpush2.bf16.msra.mxu0 0
      %739 = vmatprep.subr.bf16.mxu0 0
      %740 = vmatpush2.bf16.msra.mxu0 0
      %741 = vmatprep.subr.bf16.mxu0 0
      %742 = vmatpush2.bf16.msra.mxu0 0
      %743 = vmatprep.subr.bf16.mxu0 0
      %744 = vmatpush2.bf16.msra.mxu0 0
      %745 = vmatprep.subr.bf16.mxu0 0
      %746 = vmatpush2.bf16.msra.mxu0 0
      %747 = vmatprep.mubr.bf16.mxu0 0
      %748 = vmatmul.mubr.bf16.gmra.mxu0 %v410
      %v749 = vpop.f32.mrf.mxu0
      %v750 = vadd.f32 %v701, %v749
      %v751 = vpop.f32.mrf.mxu0
      %v752 = vpop.f32.mrf.mxu0
      %v753 = vpop.f32.mrf.mxu0
      %754 = vdwg.mxu0
      %s755 = scalar_lea.vmem %s3, 16
      %v756 = vld [vmem:[%s755] sm:$0xf]
      %v757 = vld [vmem:[%s755 + $0x4] sm:$0xf]
      %v758 = vld [vmem:[%s755 + $0x8] sm:$0xf]
      %v759 = vld [vmem:[%s755 + $0xc] sm:$0xf]
      %s760 = scalar_lea.vmem %s4, 1
      %v761 = vld [vmem:[%s760] sm:$0x1]
      %v763 = vlaneseq
      %v764 = vshrl.u32 %v763, 7
      %v765 = vsub.s32 0, %v764
      %v766 = vrot.slane %v761, %v765
      %v772 = vunpack.c.l.b16 %v756
      %v773 = vunpack.c.l.b16 %v757
      %v774 = vunpack.c.l.b16 %v758
      %v775 = vunpack.c.l.b16 %v759
      %v776 = vpack.c.b16 %v773, %v772
      %v777 = vpack.c.b16 %v775, %v774
      %780 = vmatprep.subr.bf16.mxu0 0
      %781 = vmatpush1.bf16.msra.mxu0 0
      %782 = vmatprep.subr.bf16.mxu0 0
      %783 = vmatpush1.bf16.msra.mxu0 0
      %784 = vmatprep.subr.bf16.mxu0 0
      %785 = vmatpush1.bf16.msra.mxu0 0
      %786 = vmatprep.subr.bf16.mxu0 0
      %787 = vmatpush1.bf16.msra.mxu0 0
      %788 = vmatprep.subr.bf16.mxu0 0
      %789 = vmatpush1.bf16.msra.mxu0 0
      %790 = vmatprep.subr.bf16.mxu0 0
      %791 = vmatpush1.bf16.msra.mxu0 0
      %792 = vmatprep.subr.bf16.mxu0 0
      %793 = vmatpush1.bf16.msra.mxu0 %v777
      %794 = vmatprep.subr.bf16.mxu0 0
      %795 = vmatpush1.bf16.msra.mxu0 %v776
      %796 = vmatprep.subr.bf16.mxu0 0
      %797 = vmatpush2.bf16.msra.mxu0 0
      %798 = vmatprep.subr.bf16.mxu0 0
      %799 = vmatpush2.bf16.msra.mxu0 0
      %800 = vmatprep.subr.bf16.mxu0 0
      %801 = vmatpush2.bf16.msra.mxu0 0
      %802 = vmatprep.subr.bf16.mxu0 0
      %803 = vmatpush2.bf16.msra.mxu0 0
      %804 = vmatprep.subr.bf16.mxu0 0
      %805 = vmatpush2.bf16.msra.mxu0 0
      %806 = vmatprep.subr.bf16.mxu0 0
      %807 = vmatpush2.bf16.msra.mxu0 0
      %808 = vmatprep.subr.bf16.mxu0 0
      %809 = vmatpush2.bf16.msra.mxu0 0
      %810 = vmatprep.subr.bf16.mxu0 0
      %811 = vmatpush2.bf16.msra.mxu0 0
      %812 = vmatprep.mubr.bf16.mxu0 0
      %813 = vmatmul.mubr.bf16.gmra.mxu0 %v410
      %v814 = vpop.f32.mrf.mxu0
      %v815 = vadd.f32 %v766, %v814
      %v816 = vpop.f32.mrf.mxu0
      %v817 = vpop.f32.mrf.mxu0
      %v818 = vpop.f32.mrf.mxu0
      %819 = vdwg.mxu0
      %s820 = scalar_lea.vmem %s5, 16
      %v821 = vld [vmem:[%s820] sm:$0xf]
      %v822 = vld [vmem:[%s820 + $0x4] sm:$0xf]
      %v823 = vld [vmem:[%s820 + $0x8] sm:$0xf]
      %v824 = vld [vmem:[%s820 + $0xc] sm:$0xf]
      %s825 = scalar_lea.vmem %s6, 1
      %v826 = vld [vmem:[%s825] sm:$0x1]
      %v828 = vlaneseq
      %v829 = vshrl.u32 %v828, 7
      %v830 = vsub.s32 0, %v829
      %v831 = vrot.slane %v826, %v830
      %v837 = vunpack.c.l.b16 %v821
      %v838 = vunpack.c.l.b16 %v822
      %v839 = vunpack.c.l.b16 %v823
      %v840 = vunpack.c.l.b16 %v824
      %v841 = vpack.c.b16 %v838, %v837
      %v842 = vpack.c.b16 %v840, %v839
      %845 = vmatprep.subr.bf16.mxu0 0
      %846 = vmatpush1.bf16.msra.mxu0 0
      %847 = vmatprep.subr.bf16.mxu0 0
      %848 = vmatpush1.bf16.msra.mxu0 0
      %849 = vmatprep.subr.bf16.mxu0 0
      %850 = vmatpush1.bf16.msra.mxu0 0
      %851 = vmatprep.subr.bf16.mxu0 0
      %852 = vmatpush1.bf16.msra.mxu0 0
      %853 = vmatprep.subr.bf16.mxu0 0
      %854 = vmatpush1.bf16.msra.mxu0 0
      %855 = vmatprep.subr.bf16.mxu0 0
      %856 = vmatpush1.bf16.msra.mxu0 0
      %857 = vmatprep.subr.bf16.mxu0 0
      %858 = vmatpush1.bf16.msra.mxu0 %v842
      %859 = vmatprep.subr.bf16.mxu0 0
      %860 = vmatpush1.bf16.msra.mxu0 %v841
      %861 = vmatprep.subr.bf16.mxu0 0
      %862 = vmatpush2.bf16.msra.mxu0 0
      %863 = vmatprep.subr.bf16.mxu0 0
      %864 = vmatpush2.bf16.msra.mxu0 0
      %865 = vmatprep.subr.bf16.mxu0 0
      %866 = vmatpush2.bf16.msra.mxu0 0
      %867 = vmatprep.subr.bf16.mxu0 0
      %868 = vmatpush2.bf16.msra.mxu0 0
      %869 = vmatprep.subr.bf16.mxu0 0
      %870 = vmatpush2.bf16.msra.mxu0 0
      %871 = vmatprep.subr.bf16.mxu0 0
      %872 = vmatpush2.bf16.msra.mxu0 0
      %873 = vmatprep.subr.bf16.mxu0 0
      %874 = vmatpush2.bf16.msra.mxu0 0
      %875 = vmatprep.subr.bf16.mxu0 0
      %876 = vmatpush2.bf16.msra.mxu0 0
      %877 = vmatprep.mubr.bf16.mxu0 0
      %878 = vmatmul.mubr.bf16.gmra.mxu0 %v410
      %v879 = vpop.f32.mrf.mxu0
      %v880 = vadd.f32 %v831, %v879
      %v881 = vpop.f32.mrf.mxu0
      %v882 = vpop.f32.mrf.mxu0
      %v883 = vpop.f32.mrf.mxu0
      %884 = vdwg.mxu0
      %v885 = vmul.f32 %v750, 0.35355338
      %v886 = vpack.c.bf16 %v885, %v885
      %v887 = vpack.c.bf16 %v815, %v815
      %v889 = vsel %vm581, %v886, 0
      %v892 = vsel %vm581, %v887, 0
      %894 = vmatprep.subr.bf16.mxu0 0
      %895 = vmatpush1.bf16.xpose.msra.mxu0 0
      %896 = vmatprep.subr.bf16.mxu0 0
      %897 = vmatpush1.bf16.xpose.msra.mxu0 0
      %898 = vmatprep.subr.bf16.mxu0 0
      %899 = vmatpush1.bf16.xpose.msra.mxu0 0
      %900 = vmatprep.subr.bf16.mxu0 0
      %901 = vmatpush1.bf16.xpose.msra.mxu0 0
      %902 = vmatprep.subr.bf16.mxu0 0
      %903 = vmatpush1.bf16.xpose.msra.mxu0 0
      %904 = vmatprep.subr.bf16.mxu0 0
      %905 = vmatpush1.bf16.xpose.msra.mxu0 0
      %906 = vmatprep.subr.bf16.mxu0 0
      %907 = vmatpush1.bf16.xpose.msra.mxu0 0
      %908 = vmatprep.subr.bf16.mxu0 0
      %909 = vmatpush1.bf16.xpose.msra.mxu0 %v892
      %910 = vmatprep.subr.bf16.mxu0 0
      %911 = vmatpush2.bf16.xpose.msra.mxu0 0
      %912 = vmatprep.subr.bf16.mxu0 0
      %913 = vmatpush2.bf16.xpose.msra.mxu0 0
      %914 = vmatprep.subr.bf16.mxu0 0
      %915 = vmatpush2.bf16.xpose.msra.mxu0 0
      %916 = vmatprep.subr.bf16.mxu0 0
      %917 = vmatpush2.bf16.xpose.msra.mxu0 0
      %918 = vmatprep.subr.bf16.mxu0 0
      %919 = vmatpush2.bf16.xpose.msra.mxu0 0
      %920 = vmatprep.subr.bf16.mxu0 0
      %921 = vmatpush2.bf16.xpose.msra.mxu0 0
      %922 = vmatprep.subr.bf16.mxu0 0
      %923 = vmatpush2.bf16.xpose.msra.mxu0 0
      %924 = vmatprep.subr.bf16.mxu0 0
      %925 = vmatpush2.bf16.xpose.msra.mxu0 0
      %926 = vmatprep.mubr.bf16.mxu0 0
      %927 = vmatmul.mubr.bf16.gmra.mxu0 %v889
      %v928 = vpop.f32.mrf.mxu0
      %v929 = vadd.f32 0.0, %v928
      %v930 = vpop.f32.mrf.mxu0
      %v931 = vpop.f32.mrf.mxu0
      %v932 = vpop.f32.mrf.mxu0
      %933 = vdwg.mxu0
      %v934 = vsel %vm581, %v929, -inf
      %935 = vmax.xlane.f32.xlu0 %v934
      %v936 = vpop.xlane.xlu0 %935
      %v937 = vsub.f32 %v929, %v936
      %v938 = vmul.f32 %v937, 1.442695
      %v939 = vpow.pop %v938
      %v940 = vsel %vm581, %v939, 0.0
      %941 = vadd.xlane.f32.xlu0 %v940
      %v942 = vpop.xlane.xlu0 %941
      %v943 = vrcp.pop %v942
      %v944 = vmul.f32 %v939, %v943
      %v945 = vpack.c.bf16 %v944, %v944
      %v946 = vpack.c.bf16 %v880, %v880
      %v948 = vsel %vm581, %v945, 0
      %v951 = vsel %vm644, %v946, 0
      %953 = vmatprep.subr.bf16.mxu0 0
      %954 = vmatpush1.bf16.msra.mxu0 0
      %955 = vmatprep.subr.bf16.mxu0 0
      %956 = vmatpush1.bf16.msra.mxu0 0
      %957 = vmatprep.subr.bf16.mxu0 0
      %958 = vmatpush1.bf16.msra.mxu0 0
      %959 = vmatprep.subr.bf16.mxu0 0
      %960 = vmatpush1.bf16.msra.mxu0 0
      %961 = vmatprep.subr.bf16.mxu0 0
      %962 = vmatpush1.bf16.msra.mxu0 0
      %963 = vmatprep.subr.bf16.mxu0 0
      %964 = vmatpush1.bf16.msra.mxu0 0
      %965 = vmatprep.subr.bf16.mxu0 0
      %966 = vmatpush1.bf16.msra.mxu0 0
      %967 = vmatprep.subr.bf16.mxu0 0
      %968 = vmatpush1.bf16.msra.mxu0 %v951
      %969 = vmatprep.subr.bf16.mxu0 0
      %970 = vmatpush2.bf16.msra.mxu0 0
      %971 = vmatprep.subr.bf16.mxu0 0
      %972 = vmatpush2.bf16.msra.mxu0 0
      %973 = vmatprep.subr.bf16.mxu0 0
      %974 = vmatpush2.bf16.msra.mxu0 0
      %975 = vmatprep.subr.bf16.mxu0 0
      %976 = vmatpush2.bf16.msra.mxu0 0
      %977 = vmatprep.subr.bf16.mxu0 0
      %978 = vmatpush2.bf16.msra.mxu0 0
      %979 = vmatprep.subr.bf16.mxu0 0
      %980 = vmatpush2.bf16.msra.mxu0 0
      %981 = vmatprep.subr.bf16.mxu0 0
      %982 = vmatpush2.bf16.msra.mxu0 0
      %983 = vmatprep.subr.bf16.mxu0 0
      %984 = vmatpush2.bf16.msra.mxu0 0
      %985 = vmatprep.mubr.bf16.mxu0 0
      %986 = vmatmul.mubr.bf16.gmra.mxu0 %v948
      %v987 = vpop.f32.mrf.mxu0
      %v988 = vadd.f32 0.0, %v987
      %v989 = vpop.f32.mrf.mxu0
      %v990 = vpop.f32.mrf.mxu0
      %v991 = vpop.f32.mrf.mxu0
      %992 = vdwg.mxu0
      %v993 = vpack.c.bf16 %v988, %v988
      %s994 = scalar_lea.vmem %s7, 4
      %v995 = vld [vmem:[%s994] sm:$0xf]
      %v997 = vsel %vm581, %v993, 0
      %v1000 = vsel %vm644, %v995, 0
      %1002 = vmatprep.subr.bf16.mxu0 0
      %1003 = vmatpush1.bf16.msra.mxu0 0
      %1004 = vmatprep.subr.bf16.mxu0 0
      %1005 = vmatpush1.bf16.msra.mxu0 0
      %1006 = vmatprep.subr.bf16.mxu0 0
      %1007 = vmatpush1.bf16.msra.mxu0 0
      %1008 = vmatprep.subr.bf16.mxu0 0
      %1009 = vmatpush1.bf16.msra.mxu0 0
      %1010 = vmatprep.subr.bf16.mxu0 0
      %1011 = vmatpush1.bf16.msra.mxu0 0
      %1012 = vmatprep.subr.bf16.mxu0 0
      %1013 = vmatpush1.bf16.msra.mxu0 0
      %1014 = vmatprep.subr.bf16.mxu0 0
      %1015 = vmatpush1.bf16.msra.mxu0 0
      %1016 = vmatprep.subr.bf16.mxu0 0
      %1017 = vmatpush1.bf16.msra.mxu0 %v1000
      %1018 = vmatprep.subr.bf16.mxu0 0
      %1019 = vmatpush2.bf16.msra.mxu0 0
      %1020 = vmatprep.subr.bf16.mxu0 0
      %1021 = vmatpush2.bf16.msra.mxu0 0
      %1022 = vmatprep.subr.bf16.mxu0 0
      %1023 = vmatpush2.bf16.msra.mxu0 0
      %1024 = vmatprep.subr.bf16.mxu0 0
      %1025 = vmatpush2.bf16.msra.mxu0 0
      %1026 = vmatprep.subr.bf16.mxu0 0
      %1027 = vmatpush2.bf16.msra.mxu0 0
      %1028 = vmatprep.subr.bf16.mxu0 0
      %1029 = vmatpush2.bf16.msra.mxu0 0
      %1030 = vmatprep.subr.bf16.mxu0 0
      %1031 = vmatpush2.bf16.msra.mxu0 0
      %1032 = vmatprep.subr.bf16.mxu0 0
      %1033 = vmatpush2.bf16.msra.mxu0 0
      %1034 = vmatprep.mubr.bf16.mxu0 0
      %1035 = vmatmul.mubr.bf16.gmra.mxu0 %v997
      %v1036 = vpop.f32.mrf.mxu0
      %v1037 = vadd.f32 0.0, %v1036
      %v1038 = vpop.f32.mrf.mxu0
      %v1039 = vpop.f32.mrf.mxu0
      %v1040 = vpop.f32.mrf.mxu0
      %1041 = vdwg.mxu0
      %v1043 = vsel %vm581, %v688, 0
      %v1046 = vsel %vm644, %v689, 0
      %1048 = vmatprep.subr.bf16.mxu0 0
      %1049 = vmatpush1.bf16.msra.mxu0 0
      %1050 = vmatprep.subr.bf16.mxu0 0
      %1051 = vmatpush1.bf16.msra.mxu0 0
      %1052 = vmatprep.subr.bf16.mxu0 0
      %1053 = vmatpush1.bf16.msra.mxu0 0
      %1054 = vmatprep.subr.bf16.mxu0 0
      %1055 = vmatpush1.bf16.msra.mxu0 0
      %1056 = vmatprep.subr.bf16.mxu0 0
      %1057 = vmatpush1.bf16.msra.mxu0 0
      %1058 = vmatprep.subr.bf16.mxu0 0
      %1059 = vmatpush1.bf16.msra.mxu0 0
      %1060 = vmatprep.subr.bf16.mxu0 0
      %1061 = vmatpush1.bf16.msra.mxu0 0
      %1062 = vmatprep.subr.bf16.mxu0 0
      %1063 = vmatpush1.bf16.msra.mxu0 %v1046
      %1064 = vmatprep.subr.bf16.mxu0 0
      %1065 = vmatpush2.bf16.msra.mxu0 0
      %1066 = vmatprep.subr.bf16.mxu0 0
      %1067 = vmatpush2.bf16.msra.mxu0 0
      %1068 = vmatprep.subr.bf16.mxu0 0
      %1069 = vmatpush2.bf16.msra.mxu0 0
      %1070 = vmatprep.subr.bf16.mxu0 0
      %1071 = vmatpush2.bf16.msra.mxu0 0
      %1072 = vmatprep.subr.bf16.mxu0 0
      %1073 = vmatpush2.bf16.msra.mxu0 0
      %1074 = vmatprep.subr.bf16.mxu0 0
      %1075 = vmatpush2.bf16.msra.mxu0 0
      %1076 = vmatprep.subr.bf16.mxu0 0
      %1077 = vmatpush2.bf16.msra.mxu0 0
      %1078 = vmatprep.subr.bf16.mxu0 0
      %1079 = vmatpush2.bf16.msra.mxu0 0
      %1080 = vmatprep.mubr.bf16.mxu0 0
      %1081 = vmatmul.mubr.bf16.gmra.mxu0 %v1043
      %v1082 = vpop.f32.mrf.mxu0
      %v1083 = vadd.f32 %v1037, %v1082
      %v1084 = vpop.f32.mrf.mxu0
      %v1085 = vpop.f32.mrf.mxu0
      %v1086 = vpop.f32.mrf.mxu0
      %1087 = vdwg.mxu0
      %s1088 = scalar_lea.vmem %s1, 32
      %v1089 = vld [vmem:[%s1088] sm:$0xf]
      %v1090 = vld [vmem:[%s1088 + $0x4] sm:$0xf]
      %v1091 = vld [vmem:[%s1088 + $0x8] sm:$0xf]
      %v1092 = vld [vmem:[%s1088 + $0xc] sm:$0xf]
      %s1093 = scalar_lea.vmem %s2, 2
      %v1094 = vld [vmem:[%s1093] sm:$0x1]
      %v1096 = vlaneseq
      %v1097 = vshrl.u32 %v1096, 7
      %v1098 = vsub.s32 0, %v1097
      %v1099 = vrot.slane %v1094, %v1098
      %v1105 = vunpack.c.l.b16 %v1089
      %v1106 = vunpack.c.l.b16 %v1090
      %v1107 = vunpack.c.l.b16 %v1091
      %v1108 = vunpack.c.l.b16 %v1092
      %v1109 = vpack.c.b16 %v1106, %v1105
      %v1110 = vpack.c.b16 %v1108, %v1107
      %1113 = vmatprep.subr.bf16.mxu0 0
      %1114 = vmatpush1.bf16.msra.mxu0 0
      %1115 = vmatprep.subr.bf16.mxu0 0
      %1116 = vmatpush1.bf16.msra.mxu0 0
      %1117 = vmatprep.subr.bf16.mxu0 0
      %1118 = vmatpush1.bf16.msra.mxu0 0
      %1119 = vmatprep.subr.bf16.mxu0 0
      %1120 = vmatpush1.bf16.msra.mxu0 0
      %1121 = vmatprep.subr.bf16.mxu0 0
      %1122 = vmatpush1.bf16.msra.mxu0 0
      %1123 = vmatprep.subr.bf16.mxu0 0
      %1124 = vmatpush1.bf16.msra.mxu0 0
      %1125 = vmatprep.subr.bf16.mxu0 0
      %1126 = vmatpush1.bf16.msra.mxu0 %v1110
      %1127 = vmatprep.subr.bf16.mxu0 0
      %1128 = vmatpush1.bf16.msra.mxu0 %v1109
      %1129 = vmatprep.subr.bf16.mxu0 0
      %1130 = vmatpush2.bf16.msra.mxu0 0
      %1131 = vmatprep.subr.bf16.mxu0 0
      %1132 = vmatpush2.bf16.msra.mxu0 0
      %1133 = vmatprep.subr.bf16.mxu0 0
      %1134 = vmatpush2.bf16.msra.mxu0 0
      %1135 = vmatprep.subr.bf16.mxu0 0
      %1136 = vmatpush2.bf16.msra.mxu0 0
      %1137 = vmatprep.subr.bf16.mxu0 0
      %1138 = vmatpush2.bf16.msra.mxu0 0
      %1139 = vmatprep.subr.bf16.mxu0 0
      %1140 = vmatpush2.bf16.msra.mxu0 0
      %1141 = vmatprep.subr.bf16.mxu0 0
      %1142 = vmatpush2.bf16.msra.mxu0 0
      %1143 = vmatprep.subr.bf16.mxu0 0
      %1144 = vmatpush2.bf16.msra.mxu0 0
      %1145 = vmatprep.mubr.bf16.mxu0 0
      %1146 = vmatmul.mubr.bf16.gmra.mxu0 %v410
      %v1147 = vpop.f32.mrf.mxu0
      %v1148 = vadd.f32 %v1099, %v1147
      %v1149 = vpop.f32.mrf.mxu0
      %v1150 = vpop.f32.mrf.mxu0
      %v1151 = vpop.f32.mrf.mxu0
      %1152 = vdwg.mxu0
      %s1153 = scalar_lea.vmem %s3, 32
      %v1154 = vld [vmem:[%s1153] sm:$0xf]
      %v1155 = vld [vmem:[%s1153 + $0x4] sm:$0xf]
      %v1156 = vld [vmem:[%s1153 + $0x8] sm:$0xf]
      %v1157 = vld [vmem:[%s1153 + $0xc] sm:$0xf]
      %s1158 = scalar_lea.vmem %s4, 2
      %v1159 = vld [vmem:[%s1158] sm:$0x1]
      %v1161 = vlaneseq
      %v1162 = vshrl.u32 %v1161, 7
      %v1163 = vsub.s32 0, %v1162
      %v1164 = vrot.slane %v1159, %v1163
      %v1170 = vunpack.c.l.b16 %v1154
      %v1171 = vunpack.c.l.b16 %v1155
      %v1172 = vunpack.c.l.b16 %v1156
      %v1173 = vunpack.c.l.b16 %v1157
      %v1174 = vpack.c.b16 %v1171, %v1170
      %v1175 = vpack.c.b16 %v1173, %v1172
      %1178 = vmatprep.subr.bf16.mxu0 0
      %1179 = vmatpush1.bf16.msra.mxu0 0
      %1180 = vmatprep.subr.bf16.mxu0 0
      %1181 = vmatpush1.bf16.msra.mxu0 0
      %1182 = vmatprep.subr.bf16.mxu0 0
      %1183 = vmatpush1.bf16.msra.mxu0 0
      %1184 = vmatprep.subr.bf16.mxu0 0
      %1185 = vmatpush1.bf16.msra.mxu0 0
      %1186 = vmatprep.subr.bf16.mxu0 0
      %1187 = vmatpush1.bf16.msra.mxu0 0
      %1188 = vmatprep.subr.bf16.mxu0 0
      %1189 = vmatpush1.bf16.msra.mxu0 0
      %1190 = vmatprep.subr.bf16.mxu0 0
      %1191 = vmatpush1.bf16.msra.mxu0 %v1175
      %1192 = vmatprep.subr.bf16.mxu0 0
      %1193 = vmatpush1.bf16.msra.mxu0 %v1174
      %1194 = vmatprep.subr.bf16.mxu0 0
      %1195 = vmatpush2.bf16.msra.mxu0 0
      %1196 = vmatprep.subr.bf16.mxu0 0
      %1197 = vmatpush2.bf16.msra.mxu0 0
      %1198 = vmatprep.subr.bf16.mxu0 0
      %1199 = vmatpush2.bf16.msra.mxu0 0
      %1200 = vmatprep.subr.bf16.mxu0 0
      %1201 = vmatpush2.bf16.msra.mxu0 0
      %1202 = vmatprep.subr.bf16.mxu0 0
      %1203 = vmatpush2.bf16.msra.mxu0 0
      %1204 = vmatprep.subr.bf16.mxu0 0
      %1205 = vmatpush2.bf16.msra.mxu0 0
      %1206 = vmatprep.subr.bf16.mxu0 0
      %1207 = vmatpush2.bf16.msra.mxu0 0
      %1208 = vmatprep.subr.bf16.mxu0 0
      %1209 = vmatpush2.bf16.msra.mxu0 0
      %1210 = vmatprep.mubr.bf16.mxu0 0
      %1211 = vmatmul.mubr.bf16.gmra.mxu0 %v410
      %v1212 = vpop.f32.mrf.mxu0
      %v1213 = vadd.f32 %v1164, %v1212
      %v1214 = vpop.f32.mrf.mxu0
      %v1215 = vpop.f32.mrf.mxu0
      %v1216 = vpop.f32.mrf.mxu0
      %1217 = vdwg.mxu0
      %s1218 = scalar_lea.vmem %s5, 32
      %v1219 = vld [vmem:[%s1218] sm:$0xf]
      %v1220 = vld [vmem:[%s1218 + $0x4] sm:$0xf]
      %v1221 = vld [vmem:[%s1218 + $0x8] sm:$0xf]
      %v1222 = vld [vmem:[%s1218 + $0xc] sm:$0xf]
      %s1223 = scalar_lea.vmem %s6, 2
      %v1224 = vld [vmem:[%s1223] sm:$0x1]
      %v1226 = vlaneseq
      %v1227 = vshrl.u32 %v1226, 7
      %v1228 = vsub.s32 0, %v1227
      %v1229 = vrot.slane %v1224, %v1228
      %v1235 = vunpack.c.l.b16 %v1219
      %v1236 = vunpack.c.l.b16 %v1220
      %v1237 = vunpack.c.l.b16 %v1221
      %v1238 = vunpack.c.l.b16 %v1222
      %v1239 = vpack.c.b16 %v1236, %v1235
      %v1240 = vpack.c.b16 %v1238, %v1237
      %1243 = vmatprep.subr.bf16.mxu0 0
      %1244 = vmatpush1.bf16.msra.mxu0 0
      %1245 = vmatprep.subr.bf16.mxu0 0
      %1246 = vmatpush1.bf16.msra.mxu0 0
      %1247 = vmatprep.subr.bf16.mxu0 0
      %1248 = vmatpush1.bf16.msra.mxu0 0
      %1249 = vmatprep.subr.bf16.mxu0 0
      %1250 = vmatpush1.bf16.msra.mxu0 0
      %1251 = vmatprep.subr.bf16.mxu0 0
      %1252 = vmatpush1.bf16.msra.mxu0 0
      %1253 = vmatprep.subr.bf16.mxu0 0
      %1254 = vmatpush1.bf16.msra.mxu0 0
      %1255 = vmatprep.subr.bf16.mxu0 0
      %1256 = vmatpush1.bf16.msra.mxu0 %v1240
      %1257 = vmatprep.subr.bf16.mxu0 0
      %1258 = vmatpush1.bf16.msra.mxu0 %v1239
      %1259 = vmatprep.subr.bf16.mxu0 0
      %1260 = vmatpush2.bf16.msra.mxu0 0
      %1261 = vmatprep.subr.bf16.mxu0 0
      %1262 = vmatpush2.bf16.msra.mxu0 0
      %1263 = vmatprep.subr.bf16.mxu0 0
      %1264 = vmatpush2.bf16.msra.mxu0 0
      %1265 = vmatprep.subr.bf16.mxu0 0
      %1266 = vmatpush2.bf16.msra.mxu0 0
      %1267 = vmatprep.subr.bf16.mxu0 0
      %1268 = vmatpush2.bf16.msra.mxu0 0
      %1269 = vmatprep.subr.bf16.mxu0 0
      %1270 = vmatpush2.bf16.msra.mxu0 0
      %1271 = vmatprep.subr.bf16.mxu0 0
      %1272 = vmatpush2.bf16.msra.mxu0 0
      %1273 = vmatprep.subr.bf16.mxu0 0
      %1274 = vmatpush2.bf16.msra.mxu0 0
      %1275 = vmatprep.mubr.bf16.mxu0 0
      %1276 = vmatmul.mubr.bf16.gmra.mxu0 %v410
      %v1277 = vpop.f32.mrf.mxu0
      %v1278 = vadd.f32 %v1229, %v1277
      %v1279 = vpop.f32.mrf.mxu0
      %v1280 = vpop.f32.mrf.mxu0
      %v1281 = vpop.f32.mrf.mxu0
      %1282 = vdwg.mxu0
      %v1283 = vmul.f32 %v1148, 0.35355338
      %v1284 = vpack.c.bf16 %v1283, %v1283
      %v1285 = vpack.c.bf16 %v1213, %v1213
      %v1287 = vsel %vm581, %v1284, 0
      %v1290 = vsel %vm581, %v1285, 0
      %1292 = vmatprep.subr.bf16.mxu0 0
      %1293 = vmatpush1.bf16.xpose.msra.mxu0 0
      %1294 = vmatprep.subr.bf16.mxu0 0
      %1295 = vmatpush1.bf16.xpose.msra.mxu0 0
      %1296 = vmatprep.subr.bf16.mxu0 0
      %1297 = vmatpush1.bf16.xpose.msra.mxu0 0
      %1298 = vmatprep.subr.bf16.mxu0 0
      %1299 = vmatpush1.bf16.xpose.msra.mxu0 0
      %1300 = vmatprep.subr.bf16.mxu0 0
      %1301 = vmatpush1.bf16.xpose.msra.mxu0 0
      %1302 = vmatprep.subr.bf16.mxu0 0
      %1303 = vmatpush1.bf16.xpose.msra.mxu0 0
      %1304 = vmatprep.subr.bf16.mxu0 0
      %1305 = vmatpush1.bf16.xpose.msra.mxu0 0
      %1306 = vmatprep.subr.bf16.mxu0 0
      %1307 = vmatpush1.bf16.xpose.msra.mxu0 %v1290
      %1308 = vmatprep.subr.bf16.mxu0 0
      %1309 = vmatpush2.bf16.xpose.msra.mxu0 0
      %1310 = vmatprep.subr.bf16.mxu0 0
      %1311 = vmatpush2.bf16.xpose.msra.mxu0 0
      %1312 = vmatprep.subr.bf16.mxu0 0
      %1313 = vmatpush2.bf16.xpose.msra.mxu0 0
      %1314 = vmatprep.subr.bf16.mxu0 0
      %1315 = vmatpush2.bf16.xpose.msra.mxu0 0
      %1316 = vmatprep.subr.bf16.mxu0 0
      %1317 = vmatpush2.bf16.xpose.msra.mxu0 0
      %1318 = vmatprep.subr.bf16.mxu0 0
      %1319 = vmatpush2.bf16.xpose.msra.mxu0 0
      %1320 = vmatprep.subr.bf16.mxu0 0
      %1321 = vmatpush2.bf16.xpose.msra.mxu0 0
      %1322 = vmatprep.subr.bf16.mxu0 0
      %1323 = vmatpush2.bf16.xpose.msra.mxu0 0
      %1324 = vmatprep.mubr.bf16.mxu0 0
      %1325 = vmatmul.mubr.bf16.gmra.mxu0 %v1287
      %v1326 = vpop.f32.mrf.mxu0
      %v1327 = vadd.f32 0.0, %v1326
      %v1328 = vpop.f32.mrf.mxu0
      %v1329 = vpop.f32.mrf.mxu0
      %v1330 = vpop.f32.mrf.mxu0
      %1331 = vdwg.mxu0
      %v1332 = vsel %vm581, %v1327, -inf
      %1333 = vmax.xlane.f32.xlu0 %v1332
      %v1334 = vpop.xlane.xlu0 %1333
      %v1335 = vsub.f32 %v1327, %v1334
      %v1336 = vmul.f32 %v1335, 1.442695
      %v1337 = vpow.pop %v1336
      %v1338 = vsel %vm581, %v1337, 0.0
      %1339 = vadd.xlane.f32.xlu0 %v1338
      %v1340 = vpop.xlane.xlu0 %1339
      %v1341 = vrcp.pop %v1340
      %v1342 = vmul.f32 %v1337, %v1341
      %v1343 = vpack.c.bf16 %v1342, %v1342
      %v1344 = vpack.c.bf16 %v1278, %v1278
      %v1346 = vsel %vm581, %v1343, 0
      %v1349 = vsel %vm644, %v1344, 0
      %1351 = vmatprep.subr.bf16.mxu0 0
      %1352 = vmatpush1.bf16.msra.mxu0 0
      %1353 = vmatprep.subr.bf16.mxu0 0
      %1354 = vmatpush1.bf16.msra.mxu0 0
      %1355 = vmatprep.subr.bf16.mxu0 0
      %1356 = vmatpush1.bf16.msra.mxu0 0
      %1357 = vmatprep.subr.bf16.mxu0 0
      %1358 = vmatpush1.bf16.msra.mxu0 0
      %1359 = vmatprep.subr.bf16.mxu0 0
      %1360 = vmatpush1.bf16.msra.mxu0 0
      %1361 = vmatprep.subr.bf16.mxu0 0
      %1362 = vmatpush1.bf16.msra.mxu0 0
      %1363 = vmatprep.subr.bf16.mxu0 0
      %1364 = vmatpush1.bf16.msra.mxu0 0
      %1365 = vmatprep.subr.bf16.mxu0 0
      %1366 = vmatpush1.bf16.msra.mxu0 %v1349
      %1367 = vmatprep.subr.bf16.mxu0 0
      %1368 = vmatpush2.bf16.msra.mxu0 0
      %1369 = vmatprep.subr.bf16.mxu0 0
      %1370 = vmatpush2.bf16.msra.mxu0 0
      %1371 = vmatprep.subr.bf16.mxu0 0
      %1372 = vmatpush2.bf16.msra.mxu0 0
      %1373 = vmatprep.subr.bf16.mxu0 0
      %1374 = vmatpush2.bf16.msra.mxu0 0
      %1375 = vmatprep.subr.bf16.mxu0 0
      %1376 = vmatpush2.bf16.msra.mxu0 0
      %1377 = vmatprep.subr.bf16.mxu0 0
      %1378 = vmatpush2.bf16.msra.mxu0 0
      %1379 = vmatprep.subr.bf16.mxu0 0
      %1380 = vmatpush2.bf16.msra.mxu0 0
      %1381 = vmatprep.subr.bf16.mxu0 0
      %1382 = vmatpush2.bf16.msra.mxu0 0
      %1383 = vmatprep.mubr.bf16.mxu0 0
      %1384 = vmatmul.mubr.bf16.gmra.mxu0 %v1346
      %v1385 = vpop.f32.mrf.mxu0
      %v1386 = vadd.f32 0.0, %v1385
      %v1387 = vpop.f32.mrf.mxu0
      %v1388 = vpop.f32.mrf.mxu0
      %v1389 = vpop.f32.mrf.mxu0
      %1390 = vdwg.mxu0
      %v1391 = vpack.c.bf16 %v1386, %v1386
      %s1392 = scalar_lea.vmem %s7, 8
      %v1393 = vld [vmem:[%s1392] sm:$0xf]
      %v1395 = vsel %vm581, %v1391, 0
      %v1398 = vsel %vm644, %v1393, 0
      %1400 = vmatprep.subr.bf16.mxu0 0
      %1401 = vmatpush1.bf16.msra.mxu0 0
      %1402 = vmatprep.subr.bf16.mxu0 0
      %1403 = vmatpush1.bf16.msra.mxu0 0
      %1404 = vmatprep.subr.bf16.mxu0 0
      %1405 = vmatpush1.bf16.msra.mxu0 0
      %1406 = vmatprep.subr.bf16.mxu0 0
      %1407 = vmatpush1.bf16.msra.mxu0 0
      %1408 = vmatprep.subr.bf16.mxu0 0
      %1409 = vmatpush1.bf16.msra.mxu0 0
      %1410 = vmatprep.subr.bf16.mxu0 0
      %1411 = vmatpush1.bf16.msra.mxu0 0
      %1412 = vmatprep.subr.bf16.mxu0 0
      %1413 = vmatpush1.bf16.msra.mxu0 0
      %1414 = vmatprep.subr.bf16.mxu0 0
      %1415 = vmatpush1.bf16.msra.mxu0 %v1398
      %1416 = vmatprep.subr.bf16.mxu0 0
      %1417 = vmatpush2.bf16.msra.mxu0 0
      %1418 = vmatprep.subr.bf16.mxu0 0
      %1419 = vmatpush2.bf16.msra.mxu0 0
      %1420 = vmatprep.subr.bf16.mxu0 0
      %1421 = vmatpush2.bf16.msra.mxu0 0
      %1422 = vmatprep.subr.bf16.mxu0 0
      %1423 = vmatpush2.bf16.msra.mxu0 0
      %1424 = vmatprep.subr.bf16.mxu0 0
      %1425 = vmatpush2.bf16.msra.mxu0 0
      %1426 = vmatprep.subr.bf16.mxu0 0
      %1427 = vmatpush2.bf16.msra.mxu0 0
      %1428 = vmatprep.subr.bf16.mxu0 0
      %1429 = vmatpush2.bf16.msra.mxu0 0
      %1430 = vmatprep.subr.bf16.mxu0 0
      %1431 = vmatpush2.bf16.msra.mxu0 0
      %1432 = vmatprep.mubr.bf16.mxu0 0
      %1433 = vmatmul.mubr.bf16.gmra.mxu0 %v1395
      %v1434 = vpop.f32.mrf.mxu0
      %v1435 = vadd.f32 0.0, %v1434
      %v1436 = vpop.f32.mrf.mxu0
      %v1437 = vpop.f32.mrf.mxu0
      %v1438 = vpop.f32.mrf.mxu0
      %1439 = vdwg.mxu0
      %v1440 = vadd.f32 %v1083, %v1435
      %s1441 = scalar_lea.vmem %s1, 48
      %v1442 = vld [vmem:[%s1441] sm:$0xf]
      %v1443 = vld [vmem:[%s1441 + $0x4] sm:$0xf]
      %v1444 = vld [vmem:[%s1441 + $0x8] sm:$0xf]
      %v1445 = vld [vmem:[%s1441 + $0xc] sm:$0xf]
      %s1446 = scalar_lea.vmem %s2, 3
      %v1447 = vld [vmem:[%s1446] sm:$0x1]
      %v1449 = vlaneseq
      %v1450 = vshrl.u32 %v1449, 7
      %v1451 = vsub.s32 0, %v1450
      %v1452 = vrot.slane %v1447, %v1451
      %v1458 = vunpack.c.l.b16 %v1442
      %v1459 = vunpack.c.l.b16 %v1443
      %v1460 = vunpack.c.l.b16 %v1444
      %v1461 = vunpack.c.l.b16 %v1445
      %v1462 = vpack.c.b16 %v1459, %v1458
      %v1463 = vpack.c.b16 %v1461, %v1460
      %1466 = vmatprep.subr.bf16.mxu0 0
      %1467 = vmatpush1.bf16.msra.mxu0 0
      %1468 = vmatprep.subr.bf16.mxu0 0
      %1469 = vmatpush1.bf16.msra.mxu0 0
      %1470 = vmatprep.subr.bf16.mxu0 0
      %1471 = vmatpush1.bf16.msra.mxu0 0
      %1472 = vmatprep.subr.bf16.mxu0 0
      %1473 = vmatpush1.bf16.msra.mxu0 0
      %1474 = vmatprep.subr.bf16.mxu0 0
      %1475 = vmatpush1.bf16.msra.mxu0 0
      %1476 = vmatprep.subr.bf16.mxu0 0
      %1477 = vmatpush1.bf16.msra.mxu0 0
      %1478 = vmatprep.subr.bf16.mxu0 0
      %1479 = vmatpush1.bf16.msra.mxu0 %v1463
      %1480 = vmatprep.subr.bf16.mxu0 0
      %1481 = vmatpush1.bf16.msra.mxu0 %v1462
      %1482 = vmatprep.subr.bf16.mxu0 0
      %1483 = vmatpush2.bf16.msra.mxu0 0
      %1484 = vmatprep.subr.bf16.mxu0 0
      %1485 = vmatpush2.bf16.msra.mxu0 0
      %1486 = vmatprep.subr.bf16.mxu0 0
      %1487 = vmatpush2.bf16.msra.mxu0 0
      %1488 = vmatprep.subr.bf16.mxu0 0
      %1489 = vmatpush2.bf16.msra.mxu0 0
      %1490 = vmatprep.subr.bf16.mxu0 0
      %1491 = vmatpush2.bf16.msra.mxu0 0
      %1492 = vmatprep.subr.bf16.mxu0 0
      %1493 = vmatpush2.bf16.msra.mxu0 0
      %1494 = vmatprep.subr.bf16.mxu0 0
      %1495 = vmatpush2.bf16.msra.mxu0 0
      %1496 = vmatprep.subr.bf16.mxu0 0
      %1497 = vmatpush2.bf16.msra.mxu0 0
      %1498 = vmatprep.mubr.bf16.mxu0 0
      %1499 = vmatmul.mubr.bf16.gmra.mxu0 %v410
      %v1500 = vpop.f32.mrf.mxu0
      %v1501 = vadd.f32 %v1452, %v1500
      %v1502 = vpop.f32.mrf.mxu0
      %v1503 = vpop.f32.mrf.mxu0
      %v1504 = vpop.f32.mrf.mxu0
      %1505 = vdwg.mxu0
      %s1506 = scalar_lea.vmem %s3, 48
      %v1507 = vld [vmem:[%s1506] sm:$0xf]
      %v1508 = vld [vmem:[%s1506 + $0x4] sm:$0xf]
      %v1509 = vld [vmem:[%s1506 + $0x8] sm:$0xf]
      %v1510 = vld [vmem:[%s1506 + $0xc] sm:$0xf]
      %s1511 = scalar_lea.vmem %s4, 3
      %v1512 = vld [vmem:[%s1511] sm:$0x1]
      %v1514 = vlaneseq
      %v1515 = vshrl.u32 %v1514, 7
      %v1516 = vsub.s32 0, %v1515
      %v1517 = vrot.slane %v1512, %v1516
      %v1523 = vunpack.c.l.b16 %v1507
      %v1524 = vunpack.c.l.b16 %v1508
      %v1525 = vunpack.c.l.b16 %v1509
      %v1526 = vunpack.c.l.b16 %v1510
      %v1527 = vpack.c.b16 %v1524, %v1523
      %v1528 = vpack.c.b16 %v1526, %v1525
      %1531 = vmatprep.subr.bf16.mxu0 0
      %1532 = vmatpush1.bf16.msra.mxu0 0
      %1533 = vmatprep.subr.bf16.mxu0 0
      %1534 = vmatpush1.bf16.msra.mxu0 0
      %1535 = vmatprep.subr.bf16.mxu0 0
      %1536 = vmatpush1.bf16.msra.mxu0 0
      %1537 = vmatprep.subr.bf16.mxu0 0
      %1538 = vmatpush1.bf16.msra.mxu0 0
      %1539 = vmatprep.subr.bf16.mxu0 0
      %1540 = vmatpush1.bf16.msra.mxu0 0
      %1541 = vmatprep.subr.bf16.mxu0 0
      %1542 = vmatpush1.bf16.msra.mxu0 0
      %1543 = vmatprep.subr.bf16.mxu0 0
      %1544 = vmatpush1.bf16.msra.mxu0 %v1528
      %1545 = vmatprep.subr.bf16.mxu0 0
      %1546 = vmatpush1.bf16.msra.mxu0 %v1527
      %1547 = vmatprep.subr.bf16.mxu0 0
      %1548 = vmatpush2.bf16.msra.mxu0 0
      %1549 = vmatprep.subr.bf16.mxu0 0
      %1550 = vmatpush2.bf16.msra.mxu0 0
      %1551 = vmatprep.subr.bf16.mxu0 0
      %1552 = vmatpush2.bf16.msra.mxu0 0
      %1553 = vmatprep.subr.bf16.mxu0 0
      %1554 = vmatpush2.bf16.msra.mxu0 0
      %1555 = vmatprep.subr.bf16.mxu0 0
      %1556 = vmatpush2.bf16.msra.mxu0 0
      %1557 = vmatprep.subr.bf16.mxu0 0
      %1558 = vmatpush2.bf16.msra.mxu0 0
      %1559 = vmatprep.subr.bf16.mxu0 0
      %1560 = vmatpush2.bf16.msra.mxu0 0
      %1561 = vmatprep.subr.bf16.mxu0 0
      %1562 = vmatpush2.bf16.msra.mxu0 0
      %1563 = vmatprep.mubr.bf16.mxu0 0
      %1564 = vmatmul.mubr.bf16.gmra.mxu0 %v410
      %v1565 = vpop.f32.mrf.mxu0
      %v1566 = vadd.f32 %v1517, %v1565
      %v1567 = vpop.f32.mrf.mxu0
      %v1568 = vpop.f32.mrf.mxu0
      %v1569 = vpop.f32.mrf.mxu0
      %1570 = vdwg.mxu0
      %s1571 = scalar_lea.vmem %s5, 48
      %v1572 = vld [vmem:[%s1571] sm:$0xf]
      %v1573 = vld [vmem:[%s1571 + $0x4] sm:$0xf]
      %v1574 = vld [vmem:[%s1571 + $0x8] sm:$0xf]
      %v1575 = vld [vmem:[%s1571 + $0xc] sm:$0xf]
      %s1576 = scalar_lea.vmem %s6, 3
      %v1577 = vld [vmem:[%s1576] sm:$0x1]
      %v1579 = vlaneseq
      %v1580 = vshrl.u32 %v1579, 7
      %v1581 = vsub.s32 0, %v1580
      %v1582 = vrot.slane %v1577, %v1581
      %v1588 = vunpack.c.l.b16 %v1572
      %v1589 = vunpack.c.l.b16 %v1573
      %v1590 = vunpack.c.l.b16 %v1574
      %v1591 = vunpack.c.l.b16 %v1575
      %v1592 = vpack.c.b16 %v1589, %v1588
      %v1593 = vpack.c.b16 %v1591, %v1590
      %1596 = vmatprep.subr.bf16.mxu0 0
      %1597 = vmatpush1.bf16.msra.mxu0 0
      %1598 = vmatprep.subr.bf16.mxu0 0
      %1599 = vmatpush1.bf16.msra.mxu0 0
      %1600 = vmatprep.subr.bf16.mxu0 0
      %1601 = vmatpush1.bf16.msra.mxu0 0
      %1602 = vmatprep.subr.bf16.mxu0 0
      %1603 = vmatpush1.bf16.msra.mxu0 0
      %1604 = vmatprep.subr.bf16.mxu0 0
      %1605 = vmatpush1.bf16.msra.mxu0 0
      %1606 = vmatprep.subr.bf16.mxu0 0
      %1607 = vmatpush1.bf16.msra.mxu0 0
      %1608 = vmatprep.subr.bf16.mxu0 0
      %1609 = vmatpush1.bf16.msra.mxu0 %v1593
      %1610 = vmatprep.subr.bf16.mxu0 0
      %1611 = vmatpush1.bf16.msra.mxu0 %v1592
      %1612 = vmatprep.subr.bf16.mxu0 0
      %1613 = vmatpush2.bf16.msra.mxu0 0
      %1614 = vmatprep.subr.bf16.mxu0 0
      %1615 = vmatpush2.bf16.msra.mxu0 0
      %1616 = vmatprep.subr.bf16.mxu0 0
      %1617 = vmatpush2.bf16.msra.mxu0 0
      %1618 = vmatprep.subr.bf16.mxu0 0
      %1619 = vmatpush2.bf16.msra.mxu0 0
      %1620 = vmatprep.subr.bf16.mxu0 0
      %1621 = vmatpush2.bf16.msra.mxu0 0
      %1622 = vmatprep.subr.bf16.mxu0 0
      %1623 = vmatpush2.bf16.msra.mxu0 0
      %1624 = vmatprep.subr.bf16.mxu0 0
      %1625 = vmatpush2.bf16.msra.mxu0 0
      %1626 = vmatprep.subr.bf16.mxu0 0
      %1627 = vmatpush2.bf16.msra.mxu0 0
      %1628 = vmatprep.mubr.bf16.mxu0 0
      %1629 = vmatmul.mubr.bf16.gmra.mxu0 %v410
      %v1630 = vpop.f32.mrf.mxu0
      %v1631 = vadd.f32 %v1582, %v1630
      %v1632 = vpop.f32.mrf.mxu0
      %v1633 = vpop.f32.mrf.mxu0
      %v1634 = vpop.f32.mrf.mxu0
      %1635 = vdwg.mxu0
      %v1636 = vmul.f32 %v1501, 0.35355338
      %v1637 = vpack.c.bf16 %v1636, %v1636
      %v1638 = vpack.c.bf16 %v1566, %v1566
      %v1640 = vsel %vm581, %v1637, 0
      %v1643 = vsel %vm581, %v1638, 0
      %1645 = vmatprep.subr.bf16.mxu0 0
      %1646 = vmatpush1.bf16.xpose.msra.mxu0 0
      %1647 = vmatprep.subr.bf16.mxu0 0
      %1648 = vmatpush1.bf16.xpose.msra.mxu0 0
      %1649 = vmatprep.subr.bf16.mxu0 0
      %1650 = vmatpush1.bf16.xpose.msra.mxu0 0
      %1651 = vmatprep.subr.bf16.mxu0 0
      %1652 = vmatpush1.bf16.xpose.msra.mxu0 0
      %1653 = vmatprep.subr.bf16.mxu0 0
      %1654 = vmatpush1.bf16.xpose.msra.mxu0 0
      %1655 = vmatprep.subr.bf16.mxu0 0
      %1656 = vmatpush1.bf16.xpose.msra.mxu0 0
      %1657 = vmatprep.subr.bf16.mxu0 0
      %1658 = vmatpush1.bf16.xpose.msra.mxu0 0
      %1659 = vmatprep.subr.bf16.mxu0 0
      %1660 = vmatpush1.bf16.xpose.msra.mxu0 %v1643
      %1661 = vmatprep.subr.bf16.mxu0 0
      %1662 = vmatpush2.bf16.xpose.msra.mxu0 0
      %1663 = vmatprep.subr.bf16.mxu0 0
      %1664 = vmatpush2.bf16.xpose.msra.mxu0 0
      %1665 = vmatprep.subr.bf16.mxu0 0
      %1666 = vmatpush2.bf16.xpose.msra.mxu0 0
      %1667 = vmatprep.subr.bf16.mxu0 0
      %1668 = vmatpush2.bf16.xpose.msra.mxu0 0
      %1669 = vmatprep.subr.bf16.mxu0 0
      %1670 = vmatpush2.bf16.xpose.msra.mxu0 0
      %1671 = vmatprep.subr.bf16.mxu0 0
      %1672 = vmatpush2.bf16.xpose.msra.mxu0 0
      %1673 = vmatprep.subr.bf16.mxu0 0
      %1674 = vmatpush2.bf16.xpose.msra.mxu0 0
      %1675 = vmatprep.subr.bf16.mxu0 0
      %1676 = vmatpush2.bf16.xpose.msra.mxu0 0
      %1677 = vmatprep.mubr.bf16.mxu0 0
      %1678 = vmatmul.mubr.bf16.gmra.mxu0 %v1640
      %v1679 = vpop.f32.mrf.mxu0
      %v1680 = vadd.f32 0.0, %v1679
      %v1681 = vpop.f32.mrf.mxu0
      %v1682 = vpop.f32.mrf.mxu0
      %v1683 = vpop.f32.mrf.mxu0
      %1684 = vdwg.mxu0
      %v1685 = vsel %vm581, %v1680, -inf
      %1686 = vmax.xlane.f32.xlu0 %v1685
      %v1687 = vpop.xlane.xlu0 %1686
      %v1688 = vsub.f32 %v1680, %v1687
      %v1689 = vmul.f32 %v1688, 1.442695
      %v1690 = vpow.pop %v1689
      %v1691 = vsel %vm581, %v1690, 0.0
      %1692 = vadd.xlane.f32.xlu0 %v1691
      %v1693 = vpop.xlane.xlu0 %1692
      %v1694 = vrcp.pop %v1693
      %v1695 = vmul.f32 %v1690, %v1694
      %v1696 = vpack.c.bf16 %v1695, %v1695
      %v1697 = vpack.c.bf16 %v1631, %v1631
      %v1699 = vsel %vm581, %v1696, 0
      %v1702 = vsel %vm644, %v1697, 0
      %1704 = vmatprep.subr.bf16.mxu0 0
      %1705 = vmatpush1.bf16.msra.mxu0 0
      %1706 = vmatprep.subr.bf16.mxu0 0
      %1707 = vmatpush1.bf16.msra.mxu0 0
      %1708 = vmatprep.subr.bf16.mxu0 0
      %1709 = vmatpush1.bf16.msra.mxu0 0
      %1710 = vmatprep.subr.bf16.mxu0 0
      %1711 = vmatpush1.bf16.msra.mxu0 0
      %1712 = vmatprep.subr.bf16.mxu0 0
      %1713 = vmatpush1.bf16.msra.mxu0 0
      %1714 = vmatprep.subr.bf16.mxu0 0
      %1715 = vmatpush1.bf16.msra.mxu0 0
      %1716 = vmatprep.subr.bf16.mxu0 0
      %1717 = vmatpush1.bf16.msra.mxu0 0
      %1718 = vmatprep.subr.bf16.mxu0 0
      %1719 = vmatpush1.bf16.msra.mxu0 %v1702
      %1720 = vmatprep.subr.bf16.mxu0 0
      %1721 = vmatpush2.bf16.msra.mxu0 0
      %1722 = vmatprep.subr.bf16.mxu0 0
      %1723 = vmatpush2.bf16.msra.mxu0 0
      %1724 = vmatprep.subr.bf16.mxu0 0
      %1725 = vmatpush2.bf16.msra.mxu0 0
      %1726 = vmatprep.subr.bf16.mxu0 0
      %1727 = vmatpush2.bf16.msra.mxu0 0
      %1728 = vmatprep.subr.bf16.mxu0 0
      %1729 = vmatpush2.bf16.msra.mxu0 0
      %1730 = vmatprep.subr.bf16.mxu0 0
      %1731 = vmatpush2.bf16.msra.mxu0 0
      %1732 = vmatprep.subr.bf16.mxu0 0
      %1733 = vmatpush2.bf16.msra.mxu0 0
      %1734 = vmatprep.subr.bf16.mxu0 0
      %1735 = vmatpush2.bf16.msra.mxu0 0
      %1736 = vmatprep.mubr.bf16.mxu0 0
      %1737 = vmatmul.mubr.bf16.gmra.mxu0 %v1699
      %v1738 = vpop.f32.mrf.mxu0
      %v1739 = vadd.f32 0.0, %v1738
      %v1740 = vpop.f32.mrf.mxu0
      %v1741 = vpop.f32.mrf.mxu0
      %v1742 = vpop.f32.mrf.mxu0
      %1743 = vdwg.mxu0
      %v1744 = vpack.c.bf16 %v1739, %v1739
      %s1745 = scalar_lea.vmem %s7, 12
      %v1746 = vld [vmem:[%s1745] sm:$0xf]
      %v1748 = vsel %vm581, %v1744, 0
      %v1751 = vsel %vm644, %v1746, 0
      %1753 = vmatprep.subr.bf16.mxu0 0
      %1754 = vmatpush1.bf16.msra.mxu0 0
      %1755 = vmatprep.subr.bf16.mxu0 0
      %1756 = vmatpush1.bf16.msra.mxu0 0
      %1757 = vmatprep.subr.bf16.mxu0 0
      %1758 = vmatpush1.bf16.msra.mxu0 0
      %1759 = vmatprep.subr.bf16.mxu0 0
      %1760 = vmatpush1.bf16.msra.mxu0 0
      %1761 = vmatprep.subr.bf16.mxu0 0
      %1762 = vmatpush1.bf16.msra.mxu0 0
      %1763 = vmatprep.subr.bf16.mxu0 0
      %1764 = vmatpush1.bf16.msra.mxu0 0
      %1765 = vmatprep.subr.bf16.mxu0 0
      %1766 = vmatpush1.bf16.msra.mxu0 0
      %1767 = vmatprep.subr.bf16.mxu0 0
      %1768 = vmatpush1.bf16.msra.mxu0 %v1751
      %1769 = vmatprep.subr.bf16.mxu0 0
      %1770 = vmatpush2.bf16.msra.mxu0 0
      %1771 = vmatprep.subr.bf16.mxu0 0
      %1772 = vmatpush2.bf16.msra.mxu0 0
      %1773 = vmatprep.subr.bf16.mxu0 0
      %1774 = vmatpush2.bf16.msra.mxu0 0
      %1775 = vmatprep.subr.bf16.mxu0 0
      %1776 = vmatpush2.bf16.msra.mxu0 0
      %1777 = vmatprep.subr.bf16.mxu0 0
      %1778 = vmatpush2.bf16.msra.mxu0 0
      %1779 = vmatprep.subr.bf16.mxu0 0
      %1780 = vmatpush2.bf16.msra.mxu0 0
      %1781 = vmatprep.subr.bf16.mxu0 0
      %1782 = vmatpush2.bf16.msra.mxu0 0
      %1783 = vmatprep.subr.bf16.mxu0 0
      %1784 = vmatpush2.bf16.msra.mxu0 0
      %1785 = vmatprep.mubr.bf16.mxu0 0
      %1786 = vmatmul.mubr.bf16.gmra.mxu0 %v1748
      %v1787 = vpop.f32.mrf.mxu0
      %v1788 = vadd.f32 0.0, %v1787
      %v1789 = vpop.f32.mrf.mxu0
      %v1790 = vpop.f32.mrf.mxu0
      %v1791 = vpop.f32.mrf.mxu0
      %1792 = vdwg.mxu0
      %v1793 = vadd.f32 %v1440, %v1788
      %v1794 = vadd.f32 %v383, %v1793
      %v1795 = vld [vmem:[%s8] sm:$0x1]
      %v1797 = vlaneseq
      %v1798 = vshrl.u32 %v1797, 7
      %v1799 = vsub.s32 0, %v1798
      %v1800 = vrot.slane %v1795, %v1799
      %v1802 = vadd.f32 %v1794, %v1800
      %v1803 = vsel %vm408, %v1802, 0.0
      %1804 = vadd.xlane.f32.xlu0 %v1803
      %v1805 = vpop.xlane.xlu0 %1804
      %v1806 = vrcp.pop 32.0
      %v1807 = vmul.f32 %v1805, %v1806
      %v1808 = vsub.f32 %v1802, %v1807
      %v1809 = vmul.f32 %v1808, %v1808
      %v1810 = vsel %vm408, %v1809, 0.0
      %1811 = vadd.xlane.f32.xlu0 %v1810
      %v1812 = vpop.xlane.xlu0 %1811
      %v1813 = vmul.f32 %v1812, %v1806
      %v1814 = vadd.f32 %v1813, 1e-05
      %v1815 = vrsqrt.pop %v1814
      %v1816 = vmul.f32 %v1808, %v1815
      %v1817 = vld [vmem:[%s9] sm:$0x1]
      %v1819 = vlaneseq
      %v1820 = vshrl.u32 %v1819, 7
      %v1821 = vsub.s32 0, %v1820
      %v1822 = vrot.slane %v1817, %v1821
      %v1824 = vmul.f32 %v1816, %v1822
      %v1825 = vld [vmem:[%s10] sm:$0x1]
      %v1827 = vlaneseq
      %v1828 = vshrl.u32 %v1827, 7
      %v1829 = vsub.s32 0, %v1828
      %v1830 = vrot.slane %v1825, %v1829
      %v1832 = vadd.f32 %v1824, %v1830
      %1833 = vst.msk [vmem:[%s381] sm:$0xff] %vm408, %v1832
      %p1834 = scmp.lt.s32.totalorder %s22, 1
      %s1835 = scalar_select %p1834, %s22, 1
      %s1836 = smul.addr %s1835, 8
      %s1837 = scalar_lea.vmem %s11, %s1836
      // Predicated region
      $region65: #{pretraining_model_forward.5} parent=63 // pred_check
        %p1838 = pneg %p276
      $region66: #{pretraining_model_forward.5} parent=63 // pred_check_branch
        %1840 = sbr.rel (%p1838) target = $region68
      $region67: #{pretraining_model_forward.5} parent=63 // pred_region
        _
      $region68: #{pretraining_model_forward.5} parent=63 // pred_fallthru
        _
    $region64: #{pretraining_model_forward.5} parent=5 // pred_fallthru
      _
    %p1841 = scmp.le.s32.totalorder 2, %s17
    // Predicated region
    $region69: #{pretraining_model_forward.5} parent=5 // pred_check
      %p1842 = pneg %p1841
    $region70: #{pretraining_model_forward.5} parent=5 // pred_check_branch
      %1844 = sbr.rel (%p1842) target = $region72
    $region71: #{pretraining_model_forward.5} parent=5 // pred_region
      %s1845 = ssub.s32 %s17, 2
      // Predicated region
      $region73: #{pretraining_model_forward.5} parent=71 // pred_check
        %p1846 = pneg %p282
      $region74: #{pretraining_model_forward.5} parent=71 // pred_check_branch
        %1848 = sbr.rel (%p1846) target = $region76
      $region75: #{pretraining_model_forward.5} parent=71 // pred_region
        %p1849 = scmp.lt.s32.totalorder %s23, 1
        %s1850 = scalar_select %p1849, %s23, 1
        %s1851 = smul.addr %s1850, 8
        %s1852 = scalar_lea.vmem %s11, %s1851
      $region76: #{pretraining_model_forward.5} parent=71 // pred_fallthru
        _
    $region72: #{pretraining_model_forward.5} parent=5 // pred_fallthru
      _
  $region6: #{pretraining_model_forward.5} parent=0 // loop_footer
    %s21 = sadd.s32 1, %s17
  $region7: #{pretraining_model_forward.5} parent=0 // loop_footer_branch
    %16 = sbr.rel target = $region3
  $region8: #{pretraining_model_forward.5} parent=0 // loop_exit
    _

</llo_original>
